<compile_context>
chip_gen: v6e
topology: v6e:2x2x1
jax: 0.10.0
libtpu: 0.0.40
codegen_flags: <defaults>
</compile_context>

<pallas_src>
import functools

import jax
import jax.numpy as jnp
from jax import lax
from jax.experimental import pallas as pl
from jax.experimental.pallas import tpu as pltpu

# SSD defaults: dboxes.scale_xy = 0.1, dboxes.scale_wh = 0.2
SCALE_XY = 1.0 / 0.1   # 10.0
SCALE_WH = 1.0 / 0.2   # 5.0


def _round_up(x, m):
    return (x + m - 1) // m * m


def _ssd_loss_kernel(dconst_ref, ploc_ref, plabel_ref, gloc_ref, glabel_ref,
                     o_ref, cnT_ref, *, m_true, j_chunk):
    f32 = jnp.float32
    bf16 = jnp.bfloat16

    # dboxes-derived constants, precomputed in the wrapper.
    d = dconst_ref[0]                       # (8, M)
    d_xy = d[0:2, :]                        # (2, M)
    inv_dwh = d[2:4, :]                     # (2, M)   1 / d_wh
    log_dwh = d[4:6, :]                     # (2, M)   log(d_wh)
    valid = d[6:7, :]                       # (1, M)   1.0 for real anchors

    p = ploc_ref[...]                       # (B, 4, M)
    logits = plabel_ref[...]                # (B, C, M)
    g = gloc_ref[...]                       # (B, 4, M)
    lbl = glabel_ref[...]                   # (B, 1, M) int32

    B, C, M = logits.shape
    K = j_chunk
    n_chunks = M // K

    # ---------------- localization target ----------------
    gxy = SCALE_XY * (g[:, 0:2, :] - d_xy[None]) * inv_dwh[None]      # (B,2,M)
    gwh = SCALE_WH * (jnp.log(g[:, 2:4, :]) - log_dwh[None])          # (B,2,M)

    def smooth_l1(x):
        ax = jnp.abs(x)
        return jnp.where(ax < 1.0, 0.5 * ax * ax, ax - 0.5)

    sl1_row = (jnp.sum(smooth_l1(p[:, 0:2, :] - gxy), axis=1, keepdims=True)
               + jnp.sum(smooth_l1(p[:, 2:4, :] - gwh), axis=1, keepdims=True))  # (B,1,M)

    # ---------------- positive mask ----------------
    mask = lbl > 0                                             # (B,1,M)
    mask_f = mask.astype(f32)
    pos_num = jnp.sum(mask_f, axis=2, keepdims=True)           # (B,1,1)
    sl1 = jnp.sum(jnp.where(mask, sl1_row, 0.0), axis=2, keepdims=True)  # (B,1,1)

    # ---------------- per-anchor cross entropy (f32) ----------------
    mx = jnp.max(logits, axis=1, keepdims=True)                                  # (B,1,M)
    lse = jnp.log(jnp.sum(jnp.exp(logits - mx), axis=1, keepdims=True)) + mx     # (B,1,M)
    cls_iota = lax.broadcasted_iota(jnp.int32, (B, C, M), 1)
    sel = jnp.sum(jnp.where(cls_iota == lbl, logits, 0.0), axis=1, keepdims=True)  # (B,1,M)
    con = (lse - sel) * valid[None]                            # (B,1,M)  zeroed on pad lanes
    con_neg = jnp.where(mask, 0.0, con)                        # (B,1,M)

    # ---------------- hard negative mining (chunked, no (M,M) temps) ----------
    # rank[i] = #{j : cn[j] > cn[i]} + #{j < i : cn[j] == cn[i]}   (stable ties)
    # con_neg is transposed ONCE (anchors -> sublanes) into a small scratch; the
    # j axis is then walked in K-sized chunks and reduced on the MXU.
    cnT_ref[...] = jnp.transpose(con_neg[:, 0, :])             # (M, B)

    ones_lhs = jnp.ones((8, K), bf16)                          # MXU reduction lhs
    i_row = lax.broadcasted_iota(jnp.int32, (1, M), 1)         # (1, M) anchor index
    neg_cap = f32(m_true)                                      # clamp with TRUE anchor count

    for b in range(B):                                         # B is small & static
        cn_i = con_neg[b]                                      # (1, M)

        def chunk_body(c, rank_acc):
            j0 = pl.multiple_of(c * K, 128)
            cn_j = cnT_ref[pl.ds(j0, K), pl.ds(b, 1)]          # (K, 1) sublane-major chunk
            j_col = j0 + lax.broadcasted_iota(jnp.int32, (K, 1), 0)
            cmp = jnp.logical_or(cn_j > cn_i,
                                 jnp.logical_and(cn_j == cn_i, j_col < i_row))  # (K, M)
            # exact 0/1 count via MXU matmul, f32 accumulation (counts <= M < 2^24)
            cmp_bf = cmp.astype(f32).astype(bf16)
            partial = jnp.dot(ones_lhs, cmp_bf, preferred_element_type=f32)     # (8, M)
            return rank_acc + partial[0:1, :]

        rank = lax.fori_loop(0, n_chunks, chunk_body, jnp.zeros((1, M), f32))   # (1, M)

        pos_b = pos_num[b]                                     # (1,1)
        neg_num = jnp.minimum(3.0 * pos_b, neg_cap)            # (1,1)
        neg_mask_f = (rank < neg_num).astype(f32)              # (1, M)

        closs = jnp.sum(con[b] * (mask_f[b] + neg_mask_f), axis=1, keepdims=True)  # (1,1)

        total = sl1[b] + closs
        num_mask = (pos_b > 0).astype(f32)
        loss_b = total * num_mask / jnp.maximum(pos_b, 1e-6)   # (1,1)

        o_ref[pl.ds(b, 1), :] = jnp.broadcast_to(loss_b, (1, 128))


def ssd_loss(ploc, plabel, gloc, glabel, dboxes, *, batch_block=8, j_chunk=512):
    """Scalar SSD MultiBox loss (mean over batch), computed with a Pallas TPU kernel."""
    f32 = jnp.float32
    N, _, M = ploc.shape
    C = plabel.shape[1]

    ploc = ploc.astype(f32)
    plabel = plabel.astype(f32)
    gloc = gloc.astype(f32)
    dboxes = dboxes.reshape(1, 4, M).astype(f32)
    glabel3 = glabel.reshape(N, 1, M).astype(jnp.int32)

    # ---- anchor-lane padding to a multiple of 128 (inert anchors) ----
    M_pad = _round_up(M, 128)

    def pad_lanes(x, value):
        if M_pad == M:
            return x
        pad = jnp.full(x.shape[:-1] + (M_pad - M,), value, x.dtype)
        return jnp.concatenate([x, pad], axis=-1)

    ploc_p = pad_lanes(ploc, 0.0)
    plabel_p = pad_lanes(plabel, 0.0)
    gloc_p = jnp.concatenate([pad_lanes(gloc[:, 0:2, :], 0.0),
                              pad_lanes(gloc[:, 2:4, :], 1.0)], axis=1)
    glabel_p = pad_lanes(glabel3, 0)
    d_xy = pad_lanes(dboxes[:, 0:2, :], 0.0)
    d_wh = pad_lanes(dboxes[:, 2:4, :], 1.0)

    valid = (jnp.arange(M_pad) < M).astype(f32).reshape(1, 1, M_pad)
    dconst = jnp.concatenate(
        [d_xy, 1.0 / d_wh, jnp.log(d_wh), valid,
         jnp.zeros((1, 1, M_pad), f32)], axis=1)               # (1, 8, M_pad)

    # ---- batch blocking (fill sublanes, amortize pipeline overhead) ----
    B = batch_block if N >= batch_block else N
    N_pad = _round_up(N, B)
    if N_pad != N:
        def pad_batch(x, value):
            pad = jnp.full((N_pad - N,) + x.shape[1:], value, x.dtype)
            return jnp.concatenate([x, pad], axis=0)
        ploc_p = pad_batch(ploc_p, 0.0)
        plabel_p = pad_batch(plabel_p, 0.0)
        gloc_p = pad_batch(gloc_p, 1.0)
        glabel_p = pad_batch(glabel_p, 0)

    # ---- j-chunk size for the rank loop (multiple of 128 dividing M_pad) ----
    K = 128
    for cand in (1024, 512, 256):
        if cand <= j_chunk and M_pad % cand == 0:
            K = cand
            break

    kernel = functools.partial(_ssd_loss_kernel, m_true=M, j_chunk=K)

    out = pl.pallas_call(
        kernel,
        out_shape=jax.ShapeDtypeStruct((N_pad, 128), f32),
        grid=(N_pad // B,),
        in_specs=[
            pl.BlockSpec((1, 8, M_pad), lambda n: (0, 0, 0)),   # dconst (constant)
            pl.BlockSpec((B, 4, M_pad), lambda n: (n, 0, 0)),   # ploc
            pl.BlockSpec((B, C, M_pad), lambda n: (n, 0, 0)),   # plabel
            pl.BlockSpec((B, 4, M_pad), lambda n: (n, 0, 0)),   # gloc
            pl.BlockSpec((B, 1, M_pad), lambda n: (n, 0, 0)),   # glabel
        ],
        out_specs=pl.BlockSpec((B, 128), lambda n: (n, 0)),
        scratch_shapes=[pltpu.VMEM((M_pad, B), f32)],           # transposed con_neg
        compiler_params=pltpu.CompilerParams(
            dimension_semantics=("parallel",)),
    )(dconst, ploc_p, plabel_p, gloc_p, glabel_p)

    per_sample = out[:N, 0]            # drop any batch padding
    return jnp.mean(per_sample)        # mean over batch (dim 0)


def ssd_loss_reference(ploc, plabel, gloc, glabel, dboxes):
    """Pure-JAX mirror of the PyTorch forward (stable tie-break, like the kernel)."""
    f32 = jnp.float32
    N, _, M = ploc.shape
    mask = glabel > 0
    pos_num = mask.sum(axis=1)

    gxy = SCALE_XY * (gloc[:, :2, :] - dboxes[:, :2, :]) / dboxes[:, 2:, :]
    gwh = SCALE_WH * jnp.log(gloc[:, 2:, :] / dboxes[:, 2:, :])
    vec_gd = jnp.concatenate([gxy, gwh], axis=1)

    d = ploc - vec_gd
    ad = jnp.abs(d)
    sl1e = jnp.where(ad < 1.0, 0.5 * ad * ad, ad - 0.5)
    sl1 = (mask.astype(f32) * sl1e.sum(axis=1)).sum(axis=1)

    logp = jax.nn.log_softmax(plabel, axis=1)
    con = -jnp.take_along_axis(logp, glabel[:, None, :], axis=1)[:, 0, :]

    con_neg = jnp.where(mask, 0.0, con)
    cn_i = con_neg[:, None, :]
    cn_j = con_neg[:, :, None]
    j_idx = jnp.arange(M)[None, :, None]
    i_idx = jnp.arange(M)[None, None, :]
    rank = (jnp.logical_or(cn_j > cn_i,
                           jnp.logical_and(cn_j == cn_i, j_idx < i_idx))
            .astype(f32).sum(axis=1))

    neg_num = jnp.minimum(3 * pos_num, M)[:, None].astype(f32)
    neg_mask = (rank < neg_num).astype(f32)

    closs = (con * (mask.astype(f32) + neg_mask)).sum(axis=1)
    total = sl1 + closs
    num_mask = (pos_num > 0).astype(f32)
    pos_f = jnp.maximum(pos_num.astype(f32), 1e-6)
    return jnp.mean(total * num_mask / pos_f)


if __name__ == "__main__":
    N, C, M = 2, 8, 256   # batch, num classes, num default boxes (small synthetic)

    key = jax.random.PRNGKey(0)
    k1, k2, k3, k4, k5, k6, k7 = jax.random.split(key, 7)

    # deterministic synthetic default boxes (xywh, positive w/h)
    dbox_xy = jax.random.uniform(k1, (1, 2, M), jnp.float32, 0.05, 0.95)
    dbox_wh = jax.random.uniform(k2, (1, 2, M), jnp.float32, 0.10, 0.90)
    dboxes = jnp.concatenate([dbox_xy, dbox_wh], axis=1)           # (1, 4, M)

    ploc = 0.5 * jax.random.normal(k3, (N, 4, M), jnp.float32)     # predicted offsets
    plabel = jax.random.normal(k4, (N, C, M), jnp.float32)         # predicted logits

    gloc_xy = jax.random.uniform(k5, (N, 2, M), jnp.float32, 0.05, 0.95)
    gloc_wh = jax.random.uniform(k6, (N, 2, M), jnp.float32, 0.10, 1.00)
    gloc = jnp.concatenate([gloc_xy, gloc_wh], axis=1)             # (N, 4, M)

    glabel = jax.random.randint(k7, (N, M), 0, C, jnp.int32)       # 0 = background

    out = ssd_loss(ploc, plabel, gloc, glabel, dboxes)
    out = jax.block_until_ready(out)

    ref = ssd_loss_reference(ploc, plabel, gloc, glabel, dboxes)
    assert jnp.allclose(out, ref, rtol=1e-3, atol=1e-4), (out, ref)

    print("KERNEL_OK")
</pallas_src>

<mosaic_0001>
module attributes {stable_mosaic.version = 11 : i64} {
  func.func @_ssd_loss_kernel(%arg0: i32, %arg1: memref<1x8x256xf32, #tpu.memory_space<vmem>>, %arg2: memref<2x4x256xf32, #tpu.memory_space<vmem>>, %arg3: memref<2x8x256xf32, #tpu.memory_space<vmem>>, %arg4: memref<2x4x256xf32, #tpu.memory_space<vmem>>, %arg5: memref<2x1x256xi32, #tpu.memory_space<vmem>>, %arg6: memref<2x128xf32, #tpu.memory_space<vmem>>, %arg7: memref<256x2xf32, #tpu.memory_space<vmem>>) attributes {dimension_semantics = [#tpu.dimension_semantics<parallel>], iteration_bounds = array<i64: 1>, scalar_prefetch = 0 : i64, scratch_operands = 1 : i64, tpu.core_type = #tpu.core_type<tc>, window_params = [{pipeline_mode = #tpu.pipeline_mode<synchronous>, transform_indices = @transform_0, window_bounds = array<i64: 1, 8, 256>}, {transform_indices = @transform_1, window_bounds = array<i64: 2, 4, 256>}, {transform_indices = @transform_2, window_bounds = array<i64: 2, 8, 256>}, {transform_indices = @transform_3, window_bounds = array<i64: 2, 4, 256>}, {transform_indices = @transform_4, window_bounds = array<i64: 2, 1, 256>}, {transform_indices = @transform_5, window_bounds = array<i64: 2, 128>}]} {
    %c0 = arith.constant 0 : index
    %c0_0 = arith.constant 0 : index
    %c0_1 = arith.constant 0 : index
    %0 = vector.load %arg1[%c0, %c0_0, %c0_1] : memref<1x8x256xf32, #tpu.memory_space<vmem>>, vector<1x8x256xf32>
    %1 = vector.shape_cast %0 : vector<1x8x256xf32> to vector<8x256xf32>
    %2 = vector.extract_strided_slice %1 {offsets = [0, 0], sizes = [2, 256], strides = [1, 1]} : vector<8x256xf32> to vector<2x256xf32>
    %3 = vector.extract_strided_slice %1 {offsets = [2, 0], sizes = [2, 256], strides = [1, 1]} : vector<8x256xf32> to vector<2x256xf32>
    %4 = vector.extract_strided_slice %1 {offsets = [4, 0], sizes = [2, 256], strides = [1, 1]} : vector<8x256xf32> to vector<2x256xf32>
    %5 = vector.extract_strided_slice %1 {offsets = [6, 0], sizes = [1, 256], strides = [1, 1]} : vector<8x256xf32> to vector<1x256xf32>
    %c0_2 = arith.constant 0 : index
    %c0_3 = arith.constant 0 : index
    %c0_4 = arith.constant 0 : index
    %6 = vector.load %arg2[%c0_2, %c0_3, %c0_4] : memref<2x4x256xf32, #tpu.memory_space<vmem>>, vector<2x4x256xf32>
    %c0_5 = arith.constant 0 : index
    %c0_6 = arith.constant 0 : index
    %c0_7 = arith.constant 0 : index
    %7 = vector.load %arg3[%c0_5, %c0_6, %c0_7] : memref<2x8x256xf32, #tpu.memory_space<vmem>>, vector<2x8x256xf32>
    %c0_8 = arith.constant 0 : index
    %c0_9 = arith.constant 0 : index
    %c0_10 = arith.constant 0 : index
    %8 = vector.load %arg4[%c0_8, %c0_9, %c0_10] : memref<2x4x256xf32, #tpu.memory_space<vmem>>, vector<2x4x256xf32>
    %c0_11 = arith.constant 0 : index
    %c0_12 = arith.constant 0 : index
    %c0_13 = arith.constant 0 : index
    %9 = vector.load %arg5[%c0_11, %c0_12, %c0_13] : memref<2x1x256xi32, #tpu.memory_space<vmem>>, vector<2x1x256xi32>
    %10 = vector.extract_strided_slice %8 {offsets = [0, 0, 0], sizes = [2, 2, 256], strides = [1, 1, 1]} : vector<2x4x256xf32> to vector<2x2x256xf32>
    %11 = vector.shape_cast %2 : vector<2x256xf32> to vector<1x2x256xf32>
    %12 = vector.broadcast %11 : vector<1x2x256xf32> to vector<2x2x256xf32>
    %13 = arith.subf %10, %12 : vector<2x2x256xf32>
    %cst = arith.constant 1.000000e+01 : f32
    %14 = vector.broadcast %cst : f32 to vector<2x2x256xf32>
    %15 = arith.mulf %14, %13 : vector<2x2x256xf32>
    %16 = vector.shape_cast %3 : vector<2x256xf32> to vector<1x2x256xf32>
    %17 = vector.broadcast %16 : vector<1x2x256xf32> to vector<2x2x256xf32>
    %18 = arith.mulf %15, %17 : vector<2x2x256xf32>
    %19 = vector.extract_strided_slice %8 {offsets = [0, 2, 0], sizes = [2, 2, 256], strides = [1, 1, 1]} : vector<2x4x256xf32> to vector<2x2x256xf32>
    %20 = math.log %19 : vector<2x2x256xf32>
    %21 = vector.shape_cast %4 : vector<2x256xf32> to vector<1x2x256xf32>
    %22 = vector.broadcast %21 : vector<1x2x256xf32> to vector<2x2x256xf32>
    %23 = arith.subf %20, %22 : vector<2x2x256xf32>
    %cst_14 = arith.constant 5.000000e+00 : f32
    %24 = vector.broadcast %cst_14 : f32 to vector<2x2x256xf32>
    %25 = arith.mulf %24, %23 : vector<2x2x256xf32>
    %26 = vector.extract_strided_slice %6 {offsets = [0, 0, 0], sizes = [2, 2, 256], strides = [1, 1, 1]} : vector<2x4x256xf32> to vector<2x2x256xf32>
    %27 = arith.subf %26, %18 : vector<2x2x256xf32>
    %28 = math.absf %27 : vector<2x2x256xf32>
    %cst_15 = arith.constant 1.000000e+00 : f32
    %29 = vector.broadcast %cst_15 : f32 to vector<2x2x256xf32>
    %30 = arith.cmpf olt, %28, %29 : vector<2x2x256xf32>
    %cst_16 = arith.constant 5.000000e-01 : f32
    %31 = vector.broadcast %cst_16 : f32 to vector<2x2x256xf32>
    %32 = arith.mulf %31, %28 : vector<2x2x256xf32>
    %33 = arith.mulf %32, %28 : vector<2x2x256xf32>
    %cst_17 = arith.constant 5.000000e-01 : f32
    %34 = vector.broadcast %cst_17 : f32 to vector<2x2x256xf32>
    %35 = arith.subf %28, %34 : vector<2x2x256xf32>
    %36 = arith.select %30, %33, %35 : vector<2x2x256xi1>, vector<2x2x256xf32>
    %cst_18 = arith.constant dense<0.000000e+00> : vector<2x256xf32>
    %37 = vector.multi_reduction <add>, %36, %cst_18 [1] : vector<2x2x256xf32> to vector<2x256xf32>
    %38 = vector.shape_cast %37 : vector<2x256xf32> to vector<2x1x256xf32>
    %39 = vector.extract_strided_slice %6 {offsets = [0, 2, 0], sizes = [2, 2, 256], strides = [1, 1, 1]} : vector<2x4x256xf32> to vector<2x2x256xf32>
    %40 = arith.subf %39, %25 : vector<2x2x256xf32>
    %41 = math.absf %40 : vector<2x2x256xf32>
    %cst_19 = arith.constant 1.000000e+00 : f32
    %42 = vector.broadcast %cst_19 : f32 to vector<2x2x256xf32>
    %43 = arith.cmpf olt, %41, %42 : vector<2x2x256xf32>
    %cst_20 = arith.constant 5.000000e-01 : f32
    %44 = vector.broadcast %cst_20 : f32 to vector<2x2x256xf32>
    %45 = arith.mulf %44, %41 : vector<2x2x256xf32>
    %46 = arith.mulf %45, %41 : vector<2x2x256xf32>
    %cst_21 = arith.constant 5.000000e-01 : f32
    %47 = vector.broadcast %cst_21 : f32 to vector<2x2x256xf32>
    %48 = arith.subf %41, %47 : vector<2x2x256xf32>
    %49 = arith.select %43, %46, %48 : vector<2x2x256xi1>, vector<2x2x256xf32>
    %cst_22 = arith.constant dense<0.000000e+00> : vector<2x256xf32>
    %50 = vector.multi_reduction <add>, %49, %cst_22 [1] : vector<2x2x256xf32> to vector<2x256xf32>
    %51 = vector.shape_cast %50 : vector<2x256xf32> to vector<2x1x256xf32>
    %52 = arith.addf %38, %51 : vector<2x1x256xf32>
    %c0_i32 = arith.constant 0 : i32
    %53 = vector.broadcast %c0_i32 : i32 to vector<2x1x256xi32>
    %54 = arith.cmpi sgt, %9, %53 : vector<2x1x256xi32>
    %55 = arith.extui %54 : vector<2x1x256xi1> to vector<2x1x256xi32>
    %56 = arith.sitofp %55 : vector<2x1x256xi32> to vector<2x1x256xf32>
    %cst_23 = arith.constant dense<0.000000e+00> : vector<2x1xf32>
    %57 = vector.multi_reduction <add>, %56, %cst_23 [2] : vector<2x1x256xf32> to vector<2x1xf32>
    %58 = vector.shape_cast %57 : vector<2x1xf32> to vector<2x1x1xf32>
    %cst_24 = arith.constant 0.000000e+00 : f32
    %59 = vector.broadcast %cst_24 : f32 to vector<2x1x256xf32>
    %60 = arith.select %54, %52, %59 : vector<2x1x256xi1>, vector<2x1x256xf32>
    %cst_25 = arith.constant dense<0.000000e+00> : vector<2x1xf32>
    %61 = vector.multi_reduction <add>, %60, %cst_25 [2] : vector<2x1x256xf32> to vector<2x1xf32>
    %62 = vector.shape_cast %61 : vector<2x1xf32> to vector<2x1x1xf32>
    %cst_26 = arith.constant dense<0xFF800000> : vector<2x256xf32>
    %63 = vector.multi_reduction <maximumf>, %7, %cst_26 [1] : vector<2x8x256xf32> to vector<2x256xf32>
    %64 = vector.shape_cast %63 : vector<2x256xf32> to vector<2x1x256xf32>
    %65 = vector.broadcast %64 : vector<2x1x256xf32> to vector<2x8x256xf32>
    %66 = arith.subf %7, %65 : vector<2x8x256xf32>
    %67 = math.exp %66 : vector<2x8x256xf32>
    %cst_27 = arith.constant dense<0.000000e+00> : vector<2x256xf32>
    %68 = vector.multi_reduction <add>, %67, %cst_27 [1] : vector<2x8x256xf32> to vector<2x256xf32>
    %69 = vector.shape_cast %68 : vector<2x256xf32> to vector<2x1x256xf32>
    %70 = math.log %69 : vector<2x1x256xf32>
    %71 = arith.addf %70, %64 : vector<2x1x256xf32>
    %72 = tpu.iota {dimensions = array<i32: 1>} : vector<2x8x256xi32>
    %73 = vector.broadcast %9 : vector<2x1x256xi32> to vector<2x8x256xi32>
    %74 = arith.cmpi eq, %72, %73 : vector<2x8x256xi32>
    %cst_28 = arith.constant 0.000000e+00 : f32
    %75 = vector.broadcast %cst_28 : f32 to vector<2x8x256xf32>
    %76 = arith.select %74, %7, %75 : vector<2x8x256xi1>, vector<2x8x256xf32>
    %cst_29 = arith.constant dense<0.000000e+00> : vector<2x256xf32>
    %77 = vector.multi_reduction <add>, %76, %cst_29 [1] : vector<2x8x256xf32> to vector<2x256xf32>
    %78 = vector.shape_cast %77 : vector<2x256xf32> to vector<2x1x256xf32>
    %79 = arith.subf %71, %78 : vector<2x1x256xf32>
    %80 = vector.shape_cast %5 : vector<1x256xf32> to vector<1x1x256xf32>
    %81 = vector.broadcast %80 : vector<1x1x256xf32> to vector<2x1x256xf32>
    %82 = arith.mulf %79, %81 : vector<2x1x256xf32>
    %cst_30 = arith.constant 0.000000e+00 : f32
    %83 = vector.broadcast %cst_30 : f32 to vector<2x1x256xf32>
    %84 = arith.select %54, %83, %82 : vector<2x1x256xi1>, vector<2x1x256xf32>
    %85 = vector.shape_cast %84 : vector<2x1x256xf32> to vector<2x256xf32>
    %86 = tpu.transpose %85, [1, 0] : vector<2x256xf32> -> vector<256x2xf32>
    %c0_31 = arith.constant 0 : index
    %c0_32 = arith.constant 0 : index
    %87 = vector.load %arg7[%c0_31, %c0_32] : memref<256x2xf32, #tpu.memory_space<vmem>>, vector<256x2xf32>
    tpu.vector_store %arg7[%c0_31, %c0_32], %86 {strides = array<i32>} : memref<256x2xf32, #tpu.memory_space<vmem>>, vector<256x2xf32>,
    %cst_33 = arith.constant 1.000000e+00 : bf16
    %88 = vector.broadcast %cst_33 : bf16 to vector<8x256xbf16>
    %89 = tpu.iota {dimensions = array<i32: 1>} : vector<1x256xi32>
    %90 = vector.extract_strided_slice %84 {offsets = [0, 0, 0], sizes = [1, 1, 256], strides = [1, 1, 1]} : vector<2x1x256xf32> to vector<1x1x256xf32>
    %91 = vector.shape_cast %90 : vector<1x1x256xf32> to vector<1x256xf32>
    %cst_34 = arith.constant 0.000000e+00 : f32
    %92 = vector.broadcast %cst_34 : f32 to vector<1x256xf32>
    %c0_i32_35 = arith.constant 0 : i32
    %c256_i32 = arith.constant 256 : i32
    %93 = arith.muli %c0_i32_35, %c256_i32 : i32
    %94 = tpu.assume_multiple %93, 128 : i32
    %95 = arith.index_cast %94 : i32 to index
    %c0_36 = arith.constant 0 : index
    %96 = vector.load %arg7[%95, %c0_36] : memref<256x2xf32, #tpu.memory_space<vmem>>, vector<256x1xf32>
    %97 = tpu.iota {dimensions = array<i32: 0>} : vector<256x1xi32>
    %98 = vector.broadcast %94 : i32 to vector<256x1xi32>
    %99 = arith.addi %98, %97 : vector<256x1xi32>
    %100 = vector.broadcast %96 : vector<256x1xf32> to vector<256x256xf32>
    %101 = vector.broadcast %91 : vector<1x256xf32> to vector<256x256xf32>
    %102 = arith.cmpf ogt, %100, %101 : vector<256x256xf32>
    %103 = vector.broadcast %96 : vector<256x1xf32> to vector<256x256xf32>
    %104 = vector.broadcast %91 : vector<1x256xf32> to vector<256x256xf32>
    %105 = arith.cmpf oeq, %103, %104 : vector<256x256xf32>
    %106 = vector.broadcast %99 : vector<256x1xi32> to vector<256x256xi32>
    %107 = vector.broadcast %89 : vector<1x256xi32> to vector<256x256xi32>
    %108 = arith.cmpi slt, %106, %107 : vector<256x256xi32>
    %109 = arith.andi %105, %108 : vector<256x256xi1>
    %110 = arith.ori %102, %109 : vector<256x256xi1>
    %111 = arith.extui %110 : vector<256x256xi1> to vector<256x256xi32>
    %112 = arith.sitofp %111 : vector<256x256xi32> to vector<256x256xf32>
    %113 = arith.truncf %112 : vector<256x256xf32> to vector<256x256xbf16>
    %cst_37 = arith.constant dense<0.000000e+00> : vector<8x256xf32>
    %114 = tpu.matmul %88, %113, %cst_37 {dimension_numbers = #tpu.dot_dimension_numbers<[1], [0], [0], [1], [0, 0, 1, 1], [], []>} : vector<8x256xbf16>, vector<256x256xbf16>, vector<8x256xf32> -> vector<8x256xf32>
    %115 = vector.extract_strided_slice %114 {offsets = [0, 0], sizes = [1, 256], strides = [1, 1]} : vector<8x256xf32> to vector<1x256xf32>
    %116 = arith.addf %92, %115 : vector<1x256xf32>
    %c1_i32 = arith.constant 1 : i32
    %117 = vector.extract_strided_slice %58 {offsets = [0, 0, 0], sizes = [1, 1, 1], strides = [1, 1, 1]} : vector<2x1x1xf32> to vector<1x1x1xf32>
    %118 = vector.shape_cast %117 : vector<1x1x1xf32> to vector<1x1xf32>
    %cst_38 = arith.constant 3.000000e+00 : f32
    %119 = vector.broadcast %cst_38 : f32 to vector<1x1xf32>
    %120 = arith.mulf %119, %118 : vector<1x1xf32>
    %cst_39 = arith.constant 2.560000e+02 : f32
    %121 = vector.broadcast %cst_39 : f32 to vector<1x1xf32>
    %122 = arith.minimumf %120, %121 : vector<1x1xf32>
    %123 = vector.broadcast %122 : vector<1x1xf32> to vector<1x256xf32>
    %124 = arith.cmpf olt, %116, %123 : vector<1x256xf32>
    %125 = arith.extui %124 : vector<1x256xi1> to vector<1x256xi32>
    %126 = arith.sitofp %125 : vector<1x256xi32> to vector<1x256xf32>
    %127 = vector.extract_strided_slice %82 {offsets = [0, 0, 0], sizes = [1, 1, 256], strides = [1, 1, 1]} : vector<2x1x256xf32> to vector<1x1x256xf32>
    %128 = vector.shape_cast %127 : vector<1x1x256xf32> to vector<1x256xf32>
    %129 = vector.extract_strided_slice %56 {offsets = [0, 0, 0], sizes = [1, 1, 256], strides = [1, 1, 1]} : vector<2x1x256xf32> to vector<1x1x256xf32>
    %130 = vector.shape_cast %129 : vector<1x1x256xf32> to vector<1x256xf32>
    %131 = arith.addf %130, %126 : vector<1x256xf32>
    %132 = arith.mulf %128, %131 : vector<1x256xf32>
    %cst_40 = arith.constant dense<0.000000e+00> : vector<1xf32>
    %133 = vector.multi_reduction <add>, %132, %cst_40 [1] : vector<1x256xf32> to vector<1xf32>
    %134 = vector.shape_cast %133 : vector<1xf32> to vector<1x1xf32>
    %135 = vector.extract_strided_slice %62 {offsets = [0, 0, 0], sizes = [1, 1, 1], strides = [1, 1, 1]} : vector<2x1x1xf32> to vector<1x1x1xf32>
    %136 = vector.shape_cast %135 : vector<1x1x1xf32> to vector<1x1xf32>
    %137 = arith.addf %136, %134 : vector<1x1xf32>
    %cst_41 = arith.constant 0.000000e+00 : f32
    %138 = vector.broadcast %cst_41 : f32 to vector<1x1xf32>
    %139 = arith.cmpf ogt, %118, %138 : vector<1x1xf32>
    %140 = arith.extui %139 : vector<1x1xi1> to vector<1x1xi32>
    %141 = arith.sitofp %140 : vector<1x1xi32> to vector<1x1xf32>
    %142 = arith.mulf %137, %141 : vector<1x1xf32>
    %cst_42 = arith.constant 9.99999997E-7 : f32
    %143 = vector.broadcast %cst_42 : f32 to vector<1x1xf32>
    %144 = arith.maximumf %118, %143 : vector<1x1xf32>
    %145 = arith.divf %142, %144 : vector<1x1xf32>
    %146 = vector.shape_cast %145 : vector<1x1xf32> to vector<1x1xf32>
    %147 = vector.broadcast %146 : vector<1x1xf32> to vector<1x128xf32>
    %c0_43 = arith.constant 0 : index
    %c0_44 = arith.constant 0 : index
    %148 = vector.load %arg6[%c0_43, %c0_44] : memref<2x128xf32, #tpu.memory_space<vmem>>, vector<1x128xf32>
    tpu.vector_store %arg6[%c0_43, %c0_44], %147 {strides = array<i32>} : memref<2x128xf32, #tpu.memory_space<vmem>>, vector<1x128xf32>,
    %149 = vector.extract_strided_slice %84 {offsets = [1, 0, 0], sizes = [1, 1, 256], strides = [1, 1, 1]} : vector<2x1x256xf32> to vector<1x1x256xf32>
    %150 = vector.shape_cast %149 : vector<1x1x256xf32> to vector<1x256xf32>
    %cst_45 = arith.constant 0.000000e+00 : f32
    %151 = vector.broadcast %cst_45 : f32 to vector<1x256xf32>
    %c0_i32_46 = arith.constant 0 : i32
    %c256_i32_47 = arith.constant 256 : i32
    %152 = arith.muli %c0_i32_46, %c256_i32_47 : i32
    %153 = tpu.assume_multiple %152, 128 : i32
    %154 = arith.index_cast %153 : i32 to index
    %c1 = arith.constant 1 : index
    %155 = vector.load %arg7[%154, %c1] : memref<256x2xf32, #tpu.memory_space<vmem>>, vector<256x1xf32>
    %156 = tpu.iota {dimensions = array<i32: 0>} : vector<256x1xi32>
    %157 = vector.broadcast %153 : i32 to vector<256x1xi32>
    %158 = arith.addi %157, %156 : vector<256x1xi32>
    %159 = vector.broadcast %155 : vector<256x1xf32> to vector<256x256xf32>
    %160 = vector.broadcast %150 : vector<1x256xf32> to vector<256x256xf32>
    %161 = arith.cmpf ogt, %159, %160 : vector<256x256xf32>
    %162 = vector.broadcast %155 : vector<256x1xf32> to vector<256x256xf32>
    %163 = vector.broadcast %150 : vector<1x256xf32> to vector<256x256xf32>
    %164 = arith.cmpf oeq, %162, %163 : vector<256x256xf32>
    %165 = vector.broadcast %158 : vector<256x1xi32> to vector<256x256xi32>
    %166 = vector.broadcast %89 : vector<1x256xi32> to vector<256x256xi32>
    %167 = arith.cmpi slt, %165, %166 : vector<256x256xi32>
    %168 = arith.andi %164, %167 : vector<256x256xi1>
    %169 = arith.ori %161, %168 : vector<256x256xi1>
    %170 = arith.extui %169 : vector<256x256xi1> to vector<256x256xi32>
    %171 = arith.sitofp %170 : vector<256x256xi32> to vector<256x256xf32>
    %172 = arith.truncf %171 : vector<256x256xf32> to vector<256x256xbf16>
    %cst_48 = arith.constant dense<0.000000e+00> : vector<8x256xf32>
    %173 = tpu.matmul %88, %172, %cst_48 {dimension_numbers = #tpu.dot_dimension_numbers<[1], [0], [0], [1], [0, 0, 1, 1], [], []>} : vector<8x256xbf16>, vector<256x256xbf16>, vector<8x256xf32> -> vector<8x256xf32>
    %174 = vector.extract_strided_slice %173 {offsets = [0, 0], sizes = [1, 256], strides = [1, 1]} : vector<8x256xf32> to vector<1x256xf32>
    %175 = arith.addf %151, %174 : vector<1x256xf32>
    %c1_i32_49 = arith.constant 1 : i32
    %176 = vector.extract_strided_slice %58 {offsets = [1, 0, 0], sizes = [1, 1, 1], strides = [1, 1, 1]} : vector<2x1x1xf32> to vector<1x1x1xf32>
    %177 = vector.shape_cast %176 : vector<1x1x1xf32> to vector<1x1xf32>
    %cst_50 = arith.constant 3.000000e+00 : f32
    %178 = vector.broadcast %cst_50 : f32 to vector<1x1xf32>
    %179 = arith.mulf %178, %177 : vector<1x1xf32>
    %cst_51 = arith.constant 2.560000e+02 : f32
    %180 = vector.broadcast %cst_51 : f32 to vector<1x1xf32>
    %181 = arith.minimumf %179, %180 : vector<1x1xf32>
    %182 = vector.broadcast %181 : vector<1x1xf32> to vector<1x256xf32>
    %183 = arith.cmpf olt, %175, %182 : vector<1x256xf32>
    %184 = arith.extui %183 : vector<1x256xi1> to vector<1x256xi32>
    %185 = arith.sitofp %184 : vector<1x256xi32> to vector<1x256xf32>
    %186 = vector.extract_strided_slice %82 {offsets = [1, 0, 0], sizes = [1, 1, 256], strides = [1, 1, 1]} : vector<2x1x256xf32> to vector<1x1x256xf32>
    %187 = vector.shape_cast %186 : vector<1x1x256xf32> to vector<1x256xf32>
    %188 = vector.extract_strided_slice %56 {offsets = [1, 0, 0], sizes = [1, 1, 256], strides = [1, 1, 1]} : vector<2x1x256xf32> to vector<1x1x256xf32>
    %189 = vector.shape_cast %188 : vector<1x1x256xf32> to vector<1x256xf32>
    %190 = arith.addf %189, %185 : vector<1x256xf32>
    %191 = arith.mulf %187, %190 : vector<1x256xf32>
    %cst_52 = arith.constant dense<0.000000e+00> : vector<1xf32>
    %192 = vector.multi_reduction <add>, %191, %cst_52 [1] : vector<1x256xf32> to vector<1xf32>
    %193 = vector.shape_cast %192 : vector<1xf32> to vector<1x1xf32>
    %194 = vector.extract_strided_slice %62 {offsets = [1, 0, 0], sizes = [1, 1, 1], strides = [1, 1, 1]} : vector<2x1x1xf32> to vector<1x1x1xf32>
    %195 = vector.shape_cast %194 : vector<1x1x1xf32> to vector<1x1xf32>
    %196 = arith.addf %195, %193 : vector<1x1xf32>
    %cst_53 = arith.constant 0.000000e+00 : f32
    %197 = vector.broadcast %cst_53 : f32 to vector<1x1xf32>
    %198 = arith.cmpf ogt, %177, %197 : vector<1x1xf32>
    %199 = arith.extui %198 : vector<1x1xi1> to vector<1x1xi32>
    %200 = arith.sitofp %199 : vector<1x1xi32> to vector<1x1xf32>
    %201 = arith.mulf %196, %200 : vector<1x1xf32>
    %cst_54 = arith.constant 9.99999997E-7 : f32
    %202 = vector.broadcast %cst_54 : f32 to vector<1x1xf32>
    %203 = arith.maximumf %177, %202 : vector<1x1xf32>
    %204 = arith.divf %201, %203 : vector<1x1xf32>
    %205 = vector.shape_cast %204 : vector<1x1xf32> to vector<1x1xf32>
    %206 = vector.broadcast %205 : vector<1x1xf32> to vector<1x128xf32>
    %c1_55 = arith.constant 1 : index
    %c0_56 = arith.constant 0 : index
    %207 = vector.load %arg6[%c1_55, %c0_56] : memref<2x128xf32, #tpu.memory_space<vmem>>, vector<1x128xf32>
    tpu.vector_store %arg6[%c1_55, %c0_56], %206 {strides = array<i32>} : memref<2x128xf32, #tpu.memory_space<vmem>>, vector<1x128xf32>,
    return
  }
  func.func @transform_0(%arg0: i32) -> (i32, i32, i32) {
    %c0_i32 = arith.constant 0 : i32
    %c0_i32_0 = arith.constant 0 : i32
    %c0_i32_1 = arith.constant 0 : i32
    %c0_i32_2 = arith.constant 0 : i32
    return %c0_i32, %c0_i32_0, %c0_i32_1 : i32, i32, i32
  }
  func.func @transform_1(%arg0: i32) -> (i32, i32, i32) {
    %c0_i32 = arith.constant 0 : i32
    %c0_i32_0 = arith.constant 0 : i32
    %c0_i32_1 = arith.constant 0 : i32
    return %arg0, %c0_i32, %c0_i32_0 : i32, i32, i32
  }
  func.func @transform_2(%arg0: i32) -> (i32, i32, i32) {
    %c0_i32 = arith.constant 0 : i32
    %c0_i32_0 = arith.constant 0 : i32
    %c0_i32_1 = arith.constant 0 : i32
    return %arg0, %c0_i32, %c0_i32_0 : i32, i32, i32
  }
  func.func @transform_3(%arg0: i32) -> (i32, i32, i32) {
    %c0_i32 = arith.constant 0 : i32
    %c0_i32_0 = arith.constant 0 : i32
    %c0_i32_1 = arith.constant 0 : i32
    return %arg0, %c0_i32, %c0_i32_0 : i32, i32, i32
  }
  func.func @transform_4(%arg0: i32) -> (i32, i32, i32) {
    %c0_i32 = arith.constant 0 : i32
    %c0_i32_0 = arith.constant 0 : i32
    %c0_i32_1 = arith.constant 0 : i32
    return %arg0, %c0_i32, %c0_i32_0 : i32, i32, i32
  }
  func.func @transform_5(%arg0: i32) -> (i32, i32) {
    %c0_i32 = arith.constant 0 : i32
    %c0_i32_0 = arith.constant 0 : i32
    return %arg0, %c0_i32 : i32, i32
  }
}

</mosaic_0001>

<llo_original>
// kernel: tpu_custom_call.1
$region0: #{tpu_custom_call.1}
  #allocation0 [shape = 'u32[]', space=smem, size = 0x4, offset = 0x4, fixed_abs, tag = 'smem constant byte address 0x4 - core index']
  #allocation1 [shape = 'u32[144,128]{1,0:T(1,128)}', space=vmem, size = 0x12000, scoped, tag = 'internal scratch']
  #allocation2 [shape = 'f32[256,2]{1,0:T(8,128)}', space=vmem, size = 0x20000, scoped, tag = 'scratch operand']
  %s0 = inlined_call_operand.hbm [shape: f32[1,8,256], index: 0, kind: input, shape index: {}]
  %s1 = inlined_call_operand.hbm [shape: f32[2,4,256], index: 1, kind: input, shape index: {}]
  %s2 = inlined_call_operand.hbm [shape: f32[2,8,256], index: 2, kind: input, shape index: {}]
  %s3 = inlined_call_operand.hbm [shape: f32[2,4,256], index: 3, kind: input, shape index: {}]
  %s4 = inlined_call_operand.vmem [shape: s32[2,1,256], index: 4, kind: input, shape index: {}]
  %s5 = inlined_call_operand.hbm [shape: f32[2,128], index: 5, kind: output, shape index: {}]
  %s6 = sld [smem:[#allocation0]]
  $region46: #{tpu_custom_call.1} parent=0
    _
  %s8 = ssub.s32 1, %s6
  %s9 = scalar_select 0, %s8, %s6
  $region1: #{tpu_custom_call.1} parent=0
    #allocation3 [shape = 'u8[8192]{0}', space=vmem, size = 0x2000, scoped, tag = 'input window, operand 0, single buffered']
    #allocation4 [shape = 's32[1]{0}', space=sflag, size = 0x4, scoped, tag = 'scoped memory for tpu_custom_call.1']
    #allocation5 [shape = 's32[1]{0}', space=sflag, size = 0x4, scoped, tag = 'scoped memory for tpu_custom_call.1']
    #allocation6 [shape = 'u8[8192]{0}', space=vmem, size = 0x2000, scoped, tag = 'input window, operand 1, single buffered']
    #allocation7 [shape = 's32[1]{0}', space=sflag, size = 0x4, scoped, tag = 'scoped memory for tpu_custom_call.1']
    #allocation8 [shape = 'u8[16384]{0}', space=vmem, size = 0x4000, scoped, tag = 'input window, operand 2, single buffered']
    #allocation9 [shape = 'u8[8192]{0}', space=vmem, size = 0x2000, scoped, tag = 'input window, operand 3, single buffered']
    #allocation10 [shape = 's32[1]{0}', space=sflag, size = 0x4, scoped, tag = 'scoped memory for tpu_custom_call.1']
    #allocation11 [shape = 'u8[1024]{0}', space=vmem, size = 0x400, scoped, tag = 'output window, operand 0, single buffered']
    %10 = vsyncpa [#allocation4], 0
    %11 = vsyncpa [#allocation7], 0
    %12 = vsyncpa [#allocation10], 0
    %13 = vsyncpa [#allocation5], 0
    // Predicated region
    $region2: #{tpu_custom_call.1} parent=1 // pred_check
      _
    $region3: #{tpu_custom_call.1} parent=1 // pred_check_branch
      %15 = sbr.rel (0) target = $region5
    $region4: #{tpu_custom_call.1} parent=1 // pred_region
      %s17 = ssub.s32 256, 256
      %18 = vsyncadd [#allocation4], %s17
      %s20 = sshll.u32 [#allocation3], 4
      %s21 = int_to_ptr.vmem [resolvable:$true] %s20
      %23 = dma.hbm_to_vmem [thread:$0]  %s0, 256, %s21, [#allocation4]
    $region5: #{tpu_custom_call.1} parent=1 // pred_fallthru
      _
    // Predicated region
    $region6: #{tpu_custom_call.1} parent=1 // pred_check
      _
    $region7: #{tpu_custom_call.1} parent=1 // pred_check_branch
      %25 = sbr.rel (0) target = $region9
    $region8: #{tpu_custom_call.1} parent=1 // pred_region
      %s27 = ssub.s32 256, 256
      %28 = vsyncadd [#allocation7], %s27
      %s29 = sshll.u32 [#allocation6], 4
      %s30 = int_to_ptr.vmem [resolvable:$true] %s29
      %35 = dma.hbm_to_vmem [thread:$0]  %s1, 256, %s30, [#allocation7], 128, 128, 8
    $region9: #{tpu_custom_call.1} parent=1 // pred_fallthru
      _
    // Predicated region
    $region10: #{tpu_custom_call.1} parent=1 // pred_check
      _
    $region11: #{tpu_custom_call.1} parent=1 // pred_check_branch
      %37 = sbr.rel (0) target = $region13
    $region12: #{tpu_custom_call.1} parent=1 // pred_region
      %s39 = ssub.s32 512, 512
      %40 = vsyncadd [#allocation7], %s39
      %s41 = sshll.u32 [#allocation8], 4
      %s42 = int_to_ptr.vmem [resolvable:$true] %s41
      %47 = dma.hbm_to_vmem [thread:$0]  %s2, 512, %s42, [#allocation7], 256, 256, 16
    $region13: #{tpu_custom_call.1} parent=1 // pred_fallthru
      _
    // Predicated region
    $region14: #{tpu_custom_call.1} parent=1 // pred_check
      _
    $region15: #{tpu_custom_call.1} parent=1 // pred_check_branch
      %49 = sbr.rel (0) target = $region17
    $region16: #{tpu_custom_call.1} parent=1 // pred_region
      %s51 = ssub.s32 256, 256
      %52 = vsyncadd [#allocation10], %s51
      %s53 = sshll.u32 [#allocation9], 4
      %s54 = int_to_ptr.vmem [resolvable:$true] %s53
      %59 = dma.hbm_to_vmem [thread:$0]  %s3, 256, %s54, [#allocation10], 128, 128, 8
    $region17: #{tpu_custom_call.1} parent=1 // pred_fallthru
      _
    // Predicated region
    $region18: #{tpu_custom_call.1} parent=1 // pred_check
      _
    $region19: #{tpu_custom_call.1} parent=1 // pred_check_branch
      %61 = sbr.rel (0) target = $region21
    $region20: #{tpu_custom_call.1} parent=1 // pred_region
      _
    $region21: #{tpu_custom_call.1} parent=1 // pred_fallthru
      _
    // Predicated region
    $region22: #{tpu_custom_call.1} parent=1 // pred_check
      _
    $region23: #{tpu_custom_call.1} parent=1 // pred_check_branch
      %63 = sbr.rel (0) target = $region25
    $region24: #{tpu_custom_call.1} parent=1 // pred_region
      %64 = dma.done [#allocation4], 256
    $region25: #{tpu_custom_call.1} parent=1 // pred_fallthru
      _
    // Predicated region
    $region26: #{tpu_custom_call.1} parent=1 // pred_check
      _
    $region27: #{tpu_custom_call.1} parent=1 // pred_check_branch
      %66 = sbr.rel (0) target = $region29
    $region28: #{tpu_custom_call.1} parent=1 // pred_region
      %67 = dma.done [#allocation7], 256
    $region29: #{tpu_custom_call.1} parent=1 // pred_fallthru
      _
    // Predicated region
    $region30: #{tpu_custom_call.1} parent=1 // pred_check
      _
    $region31: #{tpu_custom_call.1} parent=1 // pred_check_branch
      %69 = sbr.rel (0) target = $region33
    $region32: #{tpu_custom_call.1} parent=1 // pred_region
      %70 = dma.done [#allocation7], 512
    $region33: #{tpu_custom_call.1} parent=1 // pred_fallthru
      _
    // Predicated region
    $region34: #{tpu_custom_call.1} parent=1 // pred_check
      _
    $region35: #{tpu_custom_call.1} parent=1 // pred_check_branch
      %72 = sbr.rel (0) target = $region37
    $region36: #{tpu_custom_call.1} parent=1 // pred_region
      %73 = dma.done [#allocation10], 256
    $region37: #{tpu_custom_call.1} parent=1 // pred_fallthru
      _
    %v75 = vld [vmem:[#allocation3] sm:$0xff]
    %v76 = vld [vmem:[#allocation3 + $0x8] sm:$0xff]
    %v77 = vld [vmem:[#allocation6] sm:$0xff]
    %v78 = vld [vmem:[#allocation6 + $0x8] sm:$0xff]
    %v79 = vld [vmem:[#allocation8] sm:$0xff]
    %v80 = vld [vmem:[#allocation8 + $0x8] sm:$0xff]
    %v81 = vld [vmem:[#allocation8 + $0x10] sm:$0xff]
    %v82 = vld [vmem:[#allocation8 + $0x18] sm:$0xff]
    %v83 = vld [vmem:[#allocation9] sm:$0xff]
    %v84 = vld [vmem:[#allocation9 + $0x8] sm:$0xff]
    %v85 = vld [vmem:[%s4] sm:$0x3]
    %v86 = vld [vmem:[%s4 + $0x2] sm:$0x3]
    %v89 = vcombine.low %v75, %v76
    %v91 = vsub.f32 %v83, %v89
    %v92 = vsub.f32 %v84, %v89
    %v93 = vmul.f32 %v91, 10.0
    %v94 = vmul.f32 %v92, 10.0
    %v95 = vrot.slane %v89, 6
    %v96 = vrot.slane %v95, 4
    %v98 = vmul.f32 %v93, %v96
    %v99 = vmul.f32 %v94, %v96
    %v100 = vlog2.pop %v83
    %v101 = vmul.f32 %v100, 0.6931472
    %v102 = vlog2.pop %v84
    %v103 = vmul.f32 %v102, 0.6931472
    %v104 = vcombine.high %v75, %v76
    %v105 = vrot.slane %v104, 6
    %v107 = vsub.f32 %v101, %v105
    %v108 = vsub.f32 %v103, %v105
    %v109 = vmul.f32 %v107, 5.0
    %v110 = vmul.f32 %v108, 5.0
    %v111 = vsub.f32 %v77, %v98
    %v112 = vsub.f32 %v78, %v99
    %v113 = vand.u32 2147483647, %v111
    %v114 = vand.u32 2147483647, %v112
    %vm115 = vcmp.lt.f32.partialorder %v113, 1.0
    %vm116 = vcmp.lt.f32.partialorder %v114, 1.0
    %v117 = vmul.f32 %v113, 0.5
    %v118 = vmul.f32 %v114, 0.5
    %v119 = vmul.f32 %v117, %v113
    %v120 = vmul.f32 %v118, %v114
    %v121 = vsub.f32 %v113, 0.5
    %v122 = vsub.f32 %v114, 0.5
    %v123 = vsel %vm115, %v119, %v121
    %v124 = vsel %vm116, %v120, %v122
    %v127 = vcombine.high %v123, %v123
    %v128 = vcombine.high %v124, %v124
    %vm131 = vcmask 1041408
    %v132 = vsel %vm131, %v123, 0.0
    %v133 = vrot.slane %v132, 4
    %v134 = vadd.f32 %v132, %v133
    %v135 = vrot.slane %v134, 2
    %v136 = vadd.f32 %v134, %v135
    %v137 = vrot.slane %v136, 1
    %v138 = vadd.f32 %v136, %v137
    %v139 = vsel %vm131, %v127, 0.0
    %v140 = vrot.slane %v139, 4
    %v141 = vadd.f32 %v139, %v140
    %v142 = vrot.slane %v141, 2
    %v143 = vadd.f32 %v141, %v142
    %v144 = vrot.slane %v143, 1
    %v145 = vadd.f32 %v143, %v144
    %v146 = vsel %vm131, %v124, 0.0
    %v147 = vrot.slane %v146, 4
    %v148 = vadd.f32 %v146, %v147
    %v149 = vrot.slane %v148, 2
    %v150 = vadd.f32 %v148, %v149
    %v151 = vrot.slane %v150, 1
    %v152 = vadd.f32 %v150, %v151
    %v153 = vsel %vm131, %v128, 0.0
    %v154 = vrot.slane %v153, 4
    %v155 = vadd.f32 %v153, %v154
    %v156 = vrot.slane %v155, 2
    %v157 = vadd.f32 %v155, %v156
    %v158 = vrot.slane %v157, 1
    %v159 = vadd.f32 %v157, %v158
    %v160 = vsub.f32 %v77, %v109
    %v161 = vsub.f32 %v78, %v110
    %v162 = vand.u32 2147483647, %v160
    %v163 = vand.u32 2147483647, %v161
    %vm164 = vcmp.lt.f32.partialorder %v162, 1.0
    %vm165 = vcmp.lt.f32.partialorder %v163, 1.0
    %v166 = vmul.f32 %v162, 0.5
    %v167 = vmul.f32 %v163, 0.5
    %v168 = vmul.f32 %v166, %v162
    %v169 = vmul.f32 %v167, %v163
    %v170 = vsub.f32 %v162, 0.5
    %v171 = vsub.f32 %v163, 0.5
    %v172 = vsel %vm164, %v168, %v170
    %v173 = vsel %vm165, %v169, %v171
    %v176 = vcombine.high %v172, %v172
    %v177 = vcombine.high %v173, %v173
    %v178 = vrot.slane %v172, 2
    %v179 = vrot.slane %v176, 2
    %v180 = vrot.slane %v173, 2
    %v181 = vrot.slane %v177, 2
    %v186 = vsel %vm131, %v178, 0.0
    %v187 = vrot.slane %v186, 4
    %v188 = vadd.f32 %v186, %v187
    %v189 = vrot.slane %v188, 2
    %v190 = vadd.f32 %v188, %v189
    %v191 = vrot.slane %v190, 1
    %v192 = vadd.f32 %v190, %v191
    %v193 = vsel %vm131, %v179, 0.0
    %v194 = vrot.slane %v193, 4
    %v195 = vadd.f32 %v193, %v194
    %v196 = vrot.slane %v195, 2
    %v197 = vadd.f32 %v195, %v196
    %v198 = vrot.slane %v197, 1
    %v199 = vadd.f32 %v197, %v198
    %v200 = vsel %vm131, %v180, 0.0
    %v201 = vrot.slane %v200, 4
    %v202 = vadd.f32 %v200, %v201
    %v203 = vrot.slane %v202, 2
    %v204 = vadd.f32 %v202, %v203
    %v205 = vrot.slane %v204, 1
    %v206 = vadd.f32 %v204, %v205
    %v207 = vsel %vm131, %v181, 0.0
    %v208 = vrot.slane %v207, 4
    %v209 = vadd.f32 %v207, %v208
    %v210 = vrot.slane %v209, 2
    %v211 = vadd.f32 %v209, %v210
    %v212 = vrot.slane %v211, 1
    %v213 = vadd.f32 %v211, %v212
    %v214 = vadd.f32 %v138, %v192
    %v215 = vadd.f32 %v145, %v199
    %v216 = vadd.f32 %v152, %v206
    %v217 = vadd.f32 %v159, %v213
    %vm218 = vcmp.gt.s32.totalorder %v85, 0
    %vm219 = vcmp.gt.s32.totalorder %v86, 0
    %v220 = vsel %vm218, 1, 0
    %v221 = vsel %vm219, 1, 0
    %v222 = vcvt.s32.f32 %v220
    %v223 = vcvt.s32.f32 %v221
    %v226 = vlaneseq
    %v227 = vshrl.u32 %v226, 7
    %v228 = vsub.s32 0, %v227
    %v229 = vrot.slane %v222, %v228
    %v230 = vlaneseq
    %v231 = vshrl.u32 %v230, 7
    %v232 = vsub.s32 1, %v231
    %v233 = vrot.slane %v222, %v232
    %v234 = vlaneseq
    %v235 = vshrl.u32 %v234, 7
    %v236 = vsub.s32 0, %v235
    %v237 = vrot.slane %v223, %v236
    %v238 = vlaneseq
    %v239 = vshrl.u32 %v238, 7
    %v240 = vsub.s32 1, %v239
    %v241 = vrot.slane %v223, %v240
    %vm246 = vcmask 1040384
    %v247 = vsel %vm246, %v229, 0.0
    %v248 = vsel %vm246, %v233, 0.0
    %v249 = vadd.f32 %v247, %v248
    %250 = vadd.xlane.f32.xlu0 %v249
    %v251 = vpop.xlane.xlu0 %250
    %v252 = vsel %vm246, %v237, 0.0
    %v253 = vsel %vm246, %v241, 0.0
    %v254 = vadd.f32 %v252, %v253
    %255 = vadd.xlane.f32.xlu0 %v254
    %v256 = vpop.xlane.xlu0 %255
    %v261 = vcombine.low %v214, %v215
    %v263 = vunpack.c.l.s4 1966171168
    %v264 = vunpack.c.0.s8 %v263
    %v265 = vlaneseq
    %v266 = vshrl.u32 %v265, 7
    %v267 = vsub.s32 %v264, %v266
    %v268 = vrot.slane %v261, %v267
    %v270 = vunpack.c.l.s4 1966171168
    %v271 = vunpack.c.0.s8 %v270
    %v272 = vlaneseq
    %v273 = vshrl.u32 %v272, 7
    %v274 = vsub.s32 %v271, %v273
    %v275 = vrot.slane %v268, %v274
    %v276 = vcombine.low %v216, %v217
    %v278 = vunpack.c.l.s4 1966171168
    %v279 = vunpack.c.0.s8 %v278
    %v280 = vlaneseq
    %v281 = vshrl.u32 %v280, 7
    %v282 = vsub.s32 %v279, %v281
    %v283 = vrot.slane %v276, %v282
    %v285 = vunpack.c.l.s4 1966171168
    %v286 = vunpack.c.0.s8 %v285
    %v287 = vlaneseq
    %v288 = vshrl.u32 %v287, 7
    %v289 = vsub.s32 %v286, %v288
    %v290 = vrot.slane %v283, %v289
    %v293 = vsel %vm218, %v275, 0.0
    %v294 = vsel %vm219, %v290, 0.0
    %v297 = vlaneseq
    %v298 = vshrl.u32 %v297, 7
    %v299 = vsub.s32 0, %v298
    %v300 = vrot.slane %v293, %v299
    %v301 = vlaneseq
    %v302 = vshrl.u32 %v301, 7
    %v303 = vsub.s32 1, %v302
    %v304 = vrot.slane %v293, %v303
    %v305 = vlaneseq
    %v306 = vshrl.u32 %v305, 7
    %v307 = vsub.s32 0, %v306
    %v308 = vrot.slane %v294, %v307
    %v309 = vlaneseq
    %v310 = vshrl.u32 %v309, 7
    %v311 = vsub.s32 1, %v310
    %v312 = vrot.slane %v294, %v311
    %v317 = vsel %vm246, %v300, 0.0
    %v318 = vsel %vm246, %v304, 0.0
    %v319 = vadd.f32 %v317, %v318
    %320 = vadd.xlane.f32.xlu0 %v319
    %v321 = vpop.xlane.xlu0 %320
    %v322 = vsel %vm246, %v308, 0.0
    %v323 = vsel %vm246, %v312, 0.0
    %v324 = vadd.f32 %v322, %v323
    %325 = vadd.xlane.f32.xlu0 %v324
    %v326 = vpop.xlane.xlu0 %325
    %v327 = vrot.slane %v79, 4
    %v328 = vmax.f32 %v79, %v327
    %v329 = vrot.slane %v328, 2
    %v330 = vmax.f32 %v328, %v329
    %v331 = vrot.slane %v330, 1
    %v332 = vmax.f32 %v330, %v331
    %v333 = vrot.slane %v80, 4
    %v334 = vmax.f32 %v80, %v333
    %v335 = vrot.slane %v334, 2
    %v336 = vmax.f32 %v334, %v335
    %v337 = vrot.slane %v336, 1
    %v338 = vmax.f32 %v336, %v337
    %v339 = vrot.slane %v81, 4
    %v340 = vmax.f32 %v81, %v339
    %v341 = vrot.slane %v340, 2
    %v342 = vmax.f32 %v340, %v341
    %v343 = vrot.slane %v342, 1
    %v344 = vmax.f32 %v342, %v343
    %v345 = vrot.slane %v82, 4
    %v346 = vmax.f32 %v82, %v345
    %v347 = vrot.slane %v346, 2
    %v348 = vmax.f32 %v346, %v347
    %v349 = vrot.slane %v348, 1
    %v350 = vmax.f32 %v348, %v349
    %v351 = vsub.f32 %v79, %v332
    %v352 = vsub.f32 %v80, %v338
    %v353 = vsub.f32 %v81, %v344
    %v354 = vsub.f32 %v82, %v350
    %v355 = vmul.f32 %v351, 1.442695
    %v356 = vpow.pop %v355
    %v357 = vmul.f32 %v352, 1.442695
    %v358 = vpow.pop %v357
    %v359 = vmul.f32 %v353, 1.442695
    %v360 = vpow.pop %v359
    %v361 = vmul.f32 %v354, 1.442695
    %v362 = vpow.pop %v361
    %v363 = vrot.slane %v356, 4
    %v364 = vadd.f32 %v356, %v363
    %v365 = vrot.slane %v364, 2
    %v366 = vadd.f32 %v364, %v365
    %v367 = vrot.slane %v366, 1
    %v368 = vadd.f32 %v366, %v367
    %v369 = vrot.slane %v358, 4
    %v370 = vadd.f32 %v358, %v369
    %v371 = vrot.slane %v370, 2
    %v372 = vadd.f32 %v370, %v371
    %v373 = vrot.slane %v372, 1
    %v374 = vadd.f32 %v372, %v373
    %v375 = vrot.slane %v360, 4
    %v376 = vadd.f32 %v360, %v375
    %v377 = vrot.slane %v376, 2
    %v378 = vadd.f32 %v376, %v377
    %v379 = vrot.slane %v378, 1
    %v380 = vadd.f32 %v378, %v379
    %v381 = vrot.slane %v362, 4
    %v382 = vadd.f32 %v362, %v381
    %v383 = vrot.slane %v382, 2
    %v384 = vadd.f32 %v382, %v383
    %v385 = vrot.slane %v384, 1
    %v386 = vadd.f32 %v384, %v385
    %v387 = vlog2.pop %v368
    %v388 = vmul.f32 %v387, 0.6931472
    %v389 = vlog2.pop %v374
    %v390 = vmul.f32 %v389, 0.6931472
    %v391 = vlog2.pop %v380
    %v392 = vmul.f32 %v391, 0.6931472
    %v393 = vlog2.pop %v386
    %v394 = vmul.f32 %v393, 0.6931472
    %v395 = vadd.f32 %v388, %v332
    %v396 = vadd.f32 %v390, %v338
    %v397 = vadd.f32 %v392, %v344
    %v398 = vadd.f32 %v394, %v350
    %v399 = vlaneseq
    %v400 = vshrl.u32 %v399, 7
    %v401 = vlaneseq
    %v402 = vshrl.u32 %v401, 7
    %v403 = vsub.s32 0, %v402
    %v404 = vrot.slane %v85, %v403
    %v405 = vlaneseq
    %v406 = vshrl.u32 %v405, 7
    %v407 = vsub.s32 1, %v406
    %v408 = vrot.slane %v85, %v407
    %v409 = vlaneseq
    %v410 = vshrl.u32 %v409, 7
    %v411 = vsub.s32 0, %v410
    %v412 = vrot.slane %v86, %v411
    %v413 = vlaneseq
    %v414 = vshrl.u32 %v413, 7
    %v415 = vsub.s32 1, %v414
    %v416 = vrot.slane %v86, %v415
    %vm417 = vcmp.eq.s32.totalorder %v400, %v404
    %vm418 = vcmp.eq.s32.totalorder %v400, %v408
    %vm419 = vcmp.eq.s32.totalorder %v400, %v412
    %vm420 = vcmp.eq.s32.totalorder %v400, %v416
    %v421 = vsel %vm417, %v79, 0.0
    %v422 = vsel %vm418, %v80, 0.0
    %v423 = vsel %vm419, %v81, 0.0
    %v424 = vsel %vm420, %v82, 0.0
    %v425 = vrot.slane %v421, 4
    %v426 = vadd.f32 %v421, %v425
    %v427 = vrot.slane %v426, 2
    %v428 = vadd.f32 %v426, %v427
    %v429 = vrot.slane %v428, 1
    %v430 = vadd.f32 %v428, %v429
    %v431 = vrot.slane %v422, 4
    %v432 = vadd.f32 %v422, %v431
    %v433 = vrot.slane %v432, 2
    %v434 = vadd.f32 %v432, %v433
    %v435 = vrot.slane %v434, 1
    %v436 = vadd.f32 %v434, %v435
    %v437 = vrot.slane %v423, 4
    %v438 = vadd.f32 %v423, %v437
    %v439 = vrot.slane %v438, 2
    %v440 = vadd.f32 %v438, %v439
    %v441 = vrot.slane %v440, 1
    %v442 = vadd.f32 %v440, %v441
    %v443 = vrot.slane %v424, 4
    %v444 = vadd.f32 %v424, %v443
    %v445 = vrot.slane %v444, 2
    %v446 = vadd.f32 %v444, %v445
    %v447 = vrot.slane %v446, 1
    %v448 = vadd.f32 %v446, %v447
    %v449 = vsub.f32 %v395, %v430
    %v450 = vsub.f32 %v396, %v436
    %v451 = vsub.f32 %v397, %v442
    %v452 = vsub.f32 %v398, %v448
    %v453 = vmul.f32 %v449, %v75
    %v454 = vmul.f32 %v450, %v76
    %v455 = vmul.f32 %v451, %v75
    %v456 = vmul.f32 %v452, %v76
    %v461 = vcombine.high %v453, %v454
    %v463 = vunpack.c.l.s4 1966171168
    %v464 = vunpack.c.0.s8 %v463
    %v465 = vlaneseq
    %v466 = vshrl.u32 %v465, 7
    %v467 = vsub.s32 %v464, %v466
    %v468 = vrot.slane %v461, %v467
    %v470 = vunpack.c.l.s4 1966171168
    %v471 = vunpack.c.0.s8 %v470
    %v472 = vlaneseq
    %v473 = vshrl.u32 %v472, 7
    %v474 = vsub.s32 %v471, %v473
    %v475 = vrot.slane %v468, %v474
    %v476 = vcombine.high %v475, %v475
    %v477 = vcombine.high %v455, %v456
    %v479 = vunpack.c.l.s4 1966171168
    %v480 = vunpack.c.0.s8 %v479
    %v481 = vlaneseq
    %v482 = vshrl.u32 %v481, 7
    %v483 = vsub.s32 %v480, %v482
    %v484 = vrot.slane %v477, %v483
    %v486 = vunpack.c.l.s4 1966171168
    %v487 = vunpack.c.0.s8 %v486
    %v488 = vlaneseq
    %v489 = vshrl.u32 %v488, 7
    %v490 = vsub.s32 %v487, %v489
    %v491 = vrot.slane %v484, %v490
    %v492 = vcombine.high %v491, %v491
    %v495 = vsel %vm218, 0.0, %v476
    %v496 = vsel %vm219, 0.0, %v492
    %v499 = vcombine.low %v495, %v496
    %v501 = vunpack.c.l.s4 1966171168
    %v502 = vunpack.c.0.s8 %v501
    %v503 = vlaneseq
    %v504 = vshrl.u32 %v503, 7
    %v505 = vsub.s32 %v502, %v504
    %v506 = vrot.slane %v499, %v505
    %v507 = vcombine.high %v506, %v506
    %v509 = vunpack.c.l.s4 1966171168
    %v510 = vunpack.c.0.s8 %v509
    %v511 = vlaneseq
    %v512 = vshrl.u32 %v511, 7
    %v513 = vsub.s32 %v510, %v512
    %v514 = vrot.slane %v506, %v513
    %v516 = vunpack.c.l.s4 1966171168
    %v517 = vunpack.c.0.s8 %v516
    %v518 = vlaneseq
    %v519 = vshrl.u32 %v518, 7
    %v520 = vsub.s32 %v517, %v519
    %v521 = vrot.slane %v507, %v520
    %524 = vxpose.xlu0.b32.start [1/16] %v514, 128
    %525 = vxpose.xlu0.b32.cont [2/16] 0.0, 128
    %526 = vxpose.xlu0.b32.cont [3/16] 0.0, 128
    %527 = vxpose.xlu0.b32.cont [4/16] 0.0, 128
    %528 = vxpose.xlu0.b32.cont [5/16] 0.0, 128
    %529 = vxpose.xlu0.b32.cont [6/16] 0.0, 128
    %530 = vxpose.xlu0.b32.cont [7/16] 0.0, 128
    %531 = vxpose.xlu0.b32.cont [8/16] 0.0, 128
    %532 = vxpose.xlu0.b32.cont [9/16] 0.0, 128
    %533 = vxpose.xlu0.b32.cont [10/16] 0.0, 128
    %534 = vxpose.xlu0.b32.cont [11/16] 0.0, 128
    %535 = vxpose.xlu0.b32.cont [12/16] 0.0, 128
    %536 = vxpose.xlu0.b32.cont [13/16] 0.0, 128
    %537 = vxpose.xlu0.b32.cont [14/16] 0.0, 128
    %538 = vxpose.xlu0.b32.cont [15/16] 0.0, 128
    %539 = vxpose.xlu0.b32.end [16/16] 0.0, 128
    %v540 = vpop.trf.xlu0
    %v541 = vpop.trf.xlu0
    %v542 = vpop.trf.xlu0
    %v543 = vpop.trf.xlu0
    %v544 = vpop.trf.xlu0
    %v545 = vpop.trf.xlu0
    %v546 = vpop.trf.xlu0
    %v547 = vpop.trf.xlu0
    %v548 = vpop.trf.xlu0
    %v549 = vpop.trf.xlu0
    %v550 = vpop.trf.xlu0
    %v551 = vpop.trf.xlu0
    %v552 = vpop.trf.xlu0
    %v553 = vpop.trf.xlu0
    %v554 = vpop.trf.xlu0
    %v555 = vpop.trf.xlu0
    %556 = vxpose.xlu0.b32.start [1/16] %v521, 128
    %557 = vxpose.xlu0.b32.cont [2/16] 0.0, 128
    %558 = vxpose.xlu0.b32.cont [3/16] 0.0, 128
    %559 = vxpose.xlu0.b32.cont [4/16] 0.0, 128
    %560 = vxpose.xlu0.b32.cont [5/16] 0.0, 128
    %561 = vxpose.xlu0.b32.cont [6/16] 0.0, 128
    %562 = vxpose.xlu0.b32.cont [7/16] 0.0, 128
    %563 = vxpose.xlu0.b32.cont [8/16] 0.0, 128
    %564 = vxpose.xlu0.b32.cont [9/16] 0.0, 128
    %565 = vxpose.xlu0.b32.cont [10/16] 0.0, 128
    %566 = vxpose.xlu0.b32.cont [11/16] 0.0, 128
    %567 = vxpose.xlu0.b32.cont [12/16] 0.0, 128
    %568 = vxpose.xlu0.b32.cont [13/16] 0.0, 128
    %569 = vxpose.xlu0.b32.cont [14/16] 0.0, 128
    %570 = vxpose.xlu0.b32.cont [15/16] 0.0, 128
    %571 = vxpose.xlu0.b32.end [16/16] 0.0, 128
    %v572 = vpop.trf.xlu0
    %v573 = vpop.trf.xlu0
    %v574 = vpop.trf.xlu0
    %v575 = vpop.trf.xlu0
    %v576 = vpop.trf.xlu0
    %v577 = vpop.trf.xlu0
    %v578 = vpop.trf.xlu0
    %v579 = vpop.trf.xlu0
    %v580 = vpop.trf.xlu0
    %v581 = vpop.trf.xlu0
    %v582 = vpop.trf.xlu0
    %v583 = vpop.trf.xlu0
    %v584 = vpop.trf.xlu0
    %v585 = vpop.trf.xlu0
    %v586 = vpop.trf.xlu0
    %v587 = vpop.trf.xlu0
    %vm588 = vcmask 15360
    %589 = vst.msk [vmem:[#allocation2] sm:$0xff] %vm588, %v540
    %590 = vst.msk [vmem:[#allocation2 + $0x8] sm:$0xff] %vm588, %v541
    %591 = vst.msk [vmem:[#allocation2 + $0x10] sm:$0xff] %vm588, %v542
    %592 = vst.msk [vmem:[#allocation2 + $0x18] sm:$0xff] %vm588, %v543
    %593 = vst.msk [vmem:[#allocation2 + $0x20] sm:$0xff] %vm588, %v544
    %594 = vst.msk [vmem:[#allocation2 + $0x28] sm:$0xff] %vm588, %v545
    %595 = vst.msk [vmem:[#allocation2 + $0x30] sm:$0xff] %vm588, %v546
    %596 = vst.msk [vmem:[#allocation2 + $0x38] sm:$0xff] %vm588, %v547
    %597 = vst.msk [vmem:[#allocation2 + $0x40] sm:$0xff] %vm588, %v548
    %598 = vst.msk [vmem:[#allocation2 + $0x48] sm:$0xff] %vm588, %v549
    %599 = vst.msk [vmem:[#allocation2 + $0x50] sm:$0xff] %vm588, %v550
    %600 = vst.msk [vmem:[#allocation2 + $0x58] sm:$0xff] %vm588, %v551
    %601 = vst.msk [vmem:[#allocation2 + $0x60] sm:$0xff] %vm588, %v552
    %602 = vst.msk [vmem:[#allocation2 + $0x68] sm:$0xff] %vm588, %v553
    %603 = vst.msk [vmem:[#allocation2 + $0x70] sm:$0xff] %vm588, %v554
    %604 = vst.msk [vmem:[#allocation2 + $0x78] sm:$0xff] %vm588, %v555
    %605 = vst.msk [vmem:[#allocation2 + $0x80] sm:$0xff] %vm588, %v572
    %606 = vst.msk [vmem:[#allocation2 + $0x88] sm:$0xff] %vm588, %v573
    %607 = vst.msk [vmem:[#allocation2 + $0x90] sm:$0xff] %vm588, %v574
    %608 = vst.msk [vmem:[#allocation2 + $0x98] sm:$0xff] %vm588, %v575
    %609 = vst.msk [vmem:[#allocation2 + $0xa0] sm:$0xff] %vm588, %v576
    %610 = vst.msk [vmem:[#allocation2 + $0xa8] sm:$0xff] %vm588, %v577
    %611 = vst.msk [vmem:[#allocation2 + $0xb0] sm:$0xff] %vm588, %v578
    %612 = vst.msk [vmem:[#allocation2 + $0xb8] sm:$0xff] %vm588, %v579
    %613 = vst.msk [vmem:[#allocation2 + $0xc0] sm:$0xff] %vm588, %v580
    %614 = vst.msk [vmem:[#allocation2 + $0xc8] sm:$0xff] %vm588, %v581
    %615 = vst.msk [vmem:[#allocation2 + $0xd0] sm:$0xff] %vm588, %v582
    %616 = vst.msk [vmem:[#allocation2 + $0xd8] sm:$0xff] %vm588, %v583
    %617 = vst.msk [vmem:[#allocation2 + $0xe0] sm:$0xff] %vm588, %v584
    %618 = vst.msk [vmem:[#allocation2 + $0xe8] sm:$0xff] %vm588, %v585
    %619 = vst.msk [vmem:[#allocation2 + $0xf0] sm:$0xff] %vm588, %v586
    %620 = vst.msk [vmem:[#allocation2 + $0xf8] sm:$0xff] %vm588, %v587
    %v621 = vlaneseq
    %v622 = vand.u32 %v621, 127
    %v623 = vadd.s32 %v622, 128
    %v624 = vld [vmem:[#allocation2] sm:$0xff]
    %v625 = vld [vmem:[#allocation2 + $0x8] sm:$0xff]
    %v626 = vld [vmem:[#allocation2 + $0x10] sm:$0xff]
    %v627 = vld [vmem:[#allocation2 + $0x18] sm:$0xff]
    %v628 = vld [vmem:[#allocation2 + $0x20] sm:$0xff]
    %v629 = vld [vmem:[#allocation2 + $0x28] sm:$0xff]
    %v630 = vld [vmem:[#allocation2 + $0x30] sm:$0xff]
    %v631 = vld [vmem:[#allocation2 + $0x38] sm:$0xff]
    %v632 = vld [vmem:[#allocation2 + $0x40] sm:$0xff]
    %v633 = vld [vmem:[#allocation2 + $0x48] sm:$0xff]
    %v634 = vld [vmem:[#allocation2 + $0x50] sm:$0xff]
    %v635 = vld [vmem:[#allocation2 + $0x58] sm:$0xff]
    %v636 = vld [vmem:[#allocation2 + $0x60] sm:$0xff]
    %v637 = vld [vmem:[#allocation2 + $0x68] sm:$0xff]
    %v638 = vld [vmem:[#allocation2 + $0x70] sm:$0xff]
    %v639 = vld [vmem:[#allocation2 + $0x78] sm:$0xff]
    %v640 = vld [vmem:[#allocation2 + $0x80] sm:$0xff]
    %v641 = vld [vmem:[#allocation2 + $0x88] sm:$0xff]
    %v642 = vld [vmem:[#allocation2 + $0x90] sm:$0xff]
    %v643 = vld [vmem:[#allocation2 + $0x98] sm:$0xff]
    %v644 = vld [vmem:[#allocation2 + $0xa0] sm:$0xff]
    %v645 = vld [vmem:[#allocation2 + $0xa8] sm:$0xff]
    %v646 = vld [vmem:[#allocation2 + $0xb0] sm:$0xff]
    %v647 = vld [vmem:[#allocation2 + $0xb8] sm:$0xff]
    %v648 = vld [vmem:[#allocation2 + $0xc0] sm:$0xff]
    %v649 = vld [vmem:[#allocation2 + $0xc8] sm:$0xff]
    %v650 = vld [vmem:[#allocation2 + $0xd0] sm:$0xff]
    %v651 = vld [vmem:[#allocation2 + $0xd8] sm:$0xff]
    %v652 = vld [vmem:[#allocation2 + $0xe0] sm:$0xff]
    %v653 = vld [vmem:[#allocation2 + $0xe8] sm:$0xff]
    %v654 = vld [vmem:[#allocation2 + $0xf0] sm:$0xff]
    %v655 = vld [vmem:[#allocation2 + $0xf8] sm:$0xff]
    %v656 = vadd.s32 %v400, 8
    %v657 = vadd.s32 %v400, 16
    %v658 = vadd.s32 %v400, 24
    %v659 = vadd.s32 %v400, 32
    %v660 = vadd.s32 %v400, 40
    %v661 = vadd.s32 %v400, 48
    %v662 = vadd.s32 %v400, 56
    %v663 = vadd.s32 %v400, 64
    %v664 = vadd.s32 %v400, 72
    %v665 = vadd.s32 %v400, 80
    %v666 = vadd.s32 %v400, 88
    %v667 = vadd.s32 %v400, 96
    %v668 = vadd.s32 %v400, 104
    %v669 = vadd.s32 %v400, 112
    %v670 = vadd.s32 %v400, 120
    %v671 = vadd.s32 %v400, 128
    %v672 = vadd.s32 %v400, 136
    %v673 = vadd.s32 %v400, 144
    %v674 = vadd.s32 %v400, 152
    %v675 = vadd.s32 %v400, 160
    %v676 = vadd.s32 %v400, 168
    %v677 = vadd.s32 %v400, 176
    %v678 = vadd.s32 %v400, 184
    %v679 = vadd.s32 %v400, 192
    %v680 = vadd.s32 %v400, 200
    %v681 = vadd.s32 %v400, 208
    %v682 = vadd.s32 %v400, 216
    %v683 = vadd.s32 %v400, 224
    %v684 = vadd.s32 %v400, 232
    %v685 = vadd.s32 %v400, 240
    %v686 = vadd.s32 %v400, 248
    %v687 = vstv 0
    %v688 = vadd.s32 %v687, %v400
    %v689 = vadd.s32 %v687, %v656
    %v690 = vadd.s32 %v687, %v657
    %v691 = vadd.s32 %v687, %v658
    %v692 = vadd.s32 %v687, %v659
    %v693 = vadd.s32 %v687, %v660
    %v694 = vadd.s32 %v687, %v661
    %v695 = vadd.s32 %v687, %v662
    %v696 = vadd.s32 %v687, %v663
    %v697 = vadd.s32 %v687, %v664
    %v698 = vadd.s32 %v687, %v665
    %v699 = vadd.s32 %v687, %v666
    %v700 = vadd.s32 %v687, %v667
    %v701 = vadd.s32 %v687, %v668
    %v702 = vadd.s32 %v687, %v669
    %v703 = vadd.s32 %v687, %v670
    %v704 = vadd.s32 %v687, %v671
    %v705 = vadd.s32 %v687, %v672
    %v706 = vadd.s32 %v687, %v673
    %v707 = vadd.s32 %v687, %v674
    %v708 = vadd.s32 %v687, %v675
    %v709 = vadd.s32 %v687, %v676
    %v710 = vadd.s32 %v687, %v677
    %v711 = vadd.s32 %v687, %v678
    %v712 = vadd.s32 %v687, %v679
    %v713 = vadd.s32 %v687, %v680
    %v714 = vadd.s32 %v687, %v681
    %v715 = vadd.s32 %v687, %v682
    %v716 = vadd.s32 %v687, %v683
    %v717 = vadd.s32 %v687, %v684
    %v718 = vadd.s32 %v687, %v685
    %v719 = vadd.s32 %v687, %v686
    %721 = vset.pattern.permute.xlu0 0
    %722 = vperm.xlu0 %721, %v624
    %v723 = vpop.permute.xlu0 %722
    %726 = vset.pattern.permute.xlu0 0
    %727 = vperm.xlu0 %726, %v625
    %v728 = vpop.permute.xlu0 %727
    %731 = vset.pattern.permute.xlu0 0
    %732 = vperm.xlu0 %731, %v626
    %v733 = vpop.permute.xlu0 %732
    %736 = vset.pattern.permute.xlu0 0
    %737 = vperm.xlu0 %736, %v627
    %v738 = vpop.permute.xlu0 %737
    %741 = vset.pattern.permute.xlu0 0
    %742 = vperm.xlu0 %741, %v628
    %v743 = vpop.permute.xlu0 %742
    %746 = vset.pattern.permute.xlu0 0
    %747 = vperm.xlu0 %746, %v629
    %v748 = vpop.permute.xlu0 %747
    %751 = vset.pattern.permute.xlu0 0
    %752 = vperm.xlu0 %751, %v630
    %v753 = vpop.permute.xlu0 %752
    %756 = vset.pattern.permute.xlu0 0
    %757 = vperm.xlu0 %756, %v631
    %v758 = vpop.permute.xlu0 %757
    %761 = vset.pattern.permute.xlu0 0
    %762 = vperm.xlu0 %761, %v632
    %v763 = vpop.permute.xlu0 %762
    %766 = vset.pattern.permute.xlu0 0
    %767 = vperm.xlu0 %766, %v633
    %v768 = vpop.permute.xlu0 %767
    %771 = vset.pattern.permute.xlu0 0
    %772 = vperm.xlu0 %771, %v634
    %v773 = vpop.permute.xlu0 %772
    %776 = vset.pattern.permute.xlu0 0
    %777 = vperm.xlu0 %776, %v635
    %v778 = vpop.permute.xlu0 %777
    %781 = vset.pattern.permute.xlu0 0
    %782 = vperm.xlu0 %781, %v636
    %v783 = vpop.permute.xlu0 %782
    %786 = vset.pattern.permute.xlu0 0
    %787 = vperm.xlu0 %786, %v637
    %v788 = vpop.permute.xlu0 %787
    %791 = vset.pattern.permute.xlu0 0
    %792 = vperm.xlu0 %791, %v638
    %v793 = vpop.permute.xlu0 %792
    %796 = vset.pattern.permute.xlu0 0
    %797 = vperm.xlu0 %796, %v639
    %v798 = vpop.permute.xlu0 %797
    %801 = vset.pattern.permute.xlu0 0
    %802 = vperm.xlu0 %801, %v640
    %v803 = vpop.permute.xlu0 %802
    %806 = vset.pattern.permute.xlu0 0
    %807 = vperm.xlu0 %806, %v641
    %v808 = vpop.permute.xlu0 %807
    %811 = vset.pattern.permute.xlu0 0
    %812 = vperm.xlu0 %811, %v642
    %v813 = vpop.permute.xlu0 %812
    %816 = vset.pattern.permute.xlu0 0
    %817 = vperm.xlu0 %816, %v643
    %v818 = vpop.permute.xlu0 %817
    %821 = vset.pattern.permute.xlu0 0
    %822 = vperm.xlu0 %821, %v644
    %v823 = vpop.permute.xlu0 %822
    %826 = vset.pattern.permute.xlu0 0
    %827 = vperm.xlu0 %826, %v645
    %v828 = vpop.permute.xlu0 %827
    %831 = vset.pattern.permute.xlu0 0
    %832 = vperm.xlu0 %831, %v646
    %v833 = vpop.permute.xlu0 %832
    %836 = vset.pattern.permute.xlu0 0
    %837 = vperm.xlu0 %836, %v647
    %v838 = vpop.permute.xlu0 %837
    %841 = vset.pattern.permute.xlu0 0
    %842 = vperm.xlu0 %841, %v648
    %v843 = vpop.permute.xlu0 %842
    %846 = vset.pattern.permute.xlu0 0
    %847 = vperm.xlu0 %846, %v649
    %v848 = vpop.permute.xlu0 %847
    %851 = vset.pattern.permute.xlu0 0
    %852 = vperm.xlu0 %851, %v650
    %v853 = vpop.permute.xlu0 %852
    %856 = vset.pattern.permute.xlu0 0
    %857 = vperm.xlu0 %856, %v651
    %v858 = vpop.permute.xlu0 %857
    %861 = vset.pattern.permute.xlu0 0
    %862 = vperm.xlu0 %861, %v652
    %v863 = vpop.permute.xlu0 %862
    %866 = vset.pattern.permute.xlu0 0
    %867 = vperm.xlu0 %866, %v653
    %v868 = vpop.permute.xlu0 %867
    %871 = vset.pattern.permute.xlu0 0
    %872 = vperm.xlu0 %871, %v654
    %v873 = vpop.permute.xlu0 %872
    %876 = vset.pattern.permute.xlu0 0
    %877 = vperm.xlu0 %876, %v655
    %v878 = vpop.permute.xlu0 %877
    %v880 = vlaneseq
    %v881 = vshrl.u32 %v880, 7
    %v882 = vsub.s32 0, %v881
    %v883 = vrot.slane %v495, %v882
    %v884 = vlaneseq
    %v885 = vshrl.u32 %v884, 7
    %v886 = vsub.s32 1, %v885
    %v887 = vrot.slane %v495, %v886
    %vm890 = vcmp.gt.f32.partialorder %v723, %v883
    %vm891 = vcmp.gt.f32.partialorder %v723, %v887
    %vm892 = vcmp.gt.f32.partialorder %v728, %v883
    %vm893 = vcmp.gt.f32.partialorder %v728, %v887
    %vm894 = vcmp.gt.f32.partialorder %v733, %v883
    %vm895 = vcmp.gt.f32.partialorder %v733, %v887
    %vm896 = vcmp.gt.f32.partialorder %v738, %v883
    %vm897 = vcmp.gt.f32.partialorder %v738, %v887
    %vm898 = vcmp.gt.f32.partialorder %v743, %v883
    %vm899 = vcmp.gt.f32.partialorder %v743, %v887
    %vm900 = vcmp.gt.f32.partialorder %v748, %v883
    %vm901 = vcmp.gt.f32.partialorder %v748, %v887
    %vm902 = vcmp.gt.f32.partialorder %v753, %v883
    %vm903 = vcmp.gt.f32.partialorder %v753, %v887
    %vm904 = vcmp.gt.f32.partialorder %v758, %v883
    %vm905 = vcmp.gt.f32.partialorder %v758, %v887
    %vm906 = vcmp.gt.f32.partialorder %v763, %v883
    %vm907 = vcmp.gt.f32.partialorder %v763, %v887
    %vm908 = vcmp.gt.f32.partialorder %v768, %v883
    %vm909 = vcmp.gt.f32.partialorder %v768, %v887
    %vm910 = vcmp.gt.f32.partialorder %v773, %v883
    %vm911 = vcmp.gt.f32.partialorder %v773, %v887
    %vm912 = vcmp.gt.f32.partialorder %v778, %v883
    %vm913 = vcmp.gt.f32.partialorder %v778, %v887
    %vm914 = vcmp.gt.f32.partialorder %v783, %v883
    %vm915 = vcmp.gt.f32.partialorder %v783, %v887
    %vm916 = vcmp.gt.f32.partialorder %v788, %v883
    %vm917 = vcmp.gt.f32.partialorder %v788, %v887
    %vm918 = vcmp.gt.f32.partialorder %v793, %v883
    %vm919 = vcmp.gt.f32.partialorder %v793, %v887
    %vm920 = vcmp.gt.f32.partialorder %v798, %v883
    %vm921 = vcmp.gt.f32.partialorder %v798, %v887
    %vm922 = vcmp.gt.f32.partialorder %v803, %v883
    %vm923 = vcmp.gt.f32.partialorder %v803, %v887
    %vm924 = vcmp.gt.f32.partialorder %v808, %v883
    %vm925 = vcmp.gt.f32.partialorder %v808, %v887
    %vm926 = vcmp.gt.f32.partialorder %v813, %v883
    %vm927 = vcmp.gt.f32.partialorder %v813, %v887
    %vm928 = vcmp.gt.f32.partialorder %v818, %v883
    %vm929 = vcmp.gt.f32.partialorder %v818, %v887
    %vm930 = vcmp.gt.f32.partialorder %v823, %v883
    %vm931 = vcmp.gt.f32.partialorder %v823, %v887
    %vm932 = vcmp.gt.f32.partialorder %v828, %v883
    %vm933 = vcmp.gt.f32.partialorder %v828, %v887
    %vm934 = vcmp.gt.f32.partialorder %v833, %v883
    %vm935 = vcmp.gt.f32.partialorder %v833, %v887
    %vm936 = vcmp.gt.f32.partialorder %v838, %v883
    %vm937 = vcmp.gt.f32.partialorder %v838, %v887
    %vm938 = vcmp.gt.f32.partialorder %v843, %v883
    %vm939 = vcmp.gt.f32.partialorder %v843, %v887
    %vm940 = vcmp.gt.f32.partialorder %v848, %v883
    %vm941 = vcmp.gt.f32.partialorder %v848, %v887
    %vm942 = vcmp.gt.f32.partialorder %v853, %v883
    %vm943 = vcmp.gt.f32.partialorder %v853, %v887
    %vm944 = vcmp.gt.f32.partialorder %v858, %v883
    %vm945 = vcmp.gt.f32.partialorder %v858, %v887
    %vm946 = vcmp.gt.f32.partialorder %v863, %v883
    %vm947 = vcmp.gt.f32.partialorder %v863, %v887
    %vm948 = vcmp.gt.f32.partialorder %v868, %v883
    %vm949 = vcmp.gt.f32.partialorder %v868, %v887
    %vm950 = vcmp.gt.f32.partialorder %v873, %v883
    %vm951 = vcmp.gt.f32.partialorder %v873, %v887
    %vm952 = vcmp.gt.f32.partialorder %v878, %v883
    %vm953 = vcmp.gt.f32.partialorder %v878, %v887
    %vm954 = vcmp.eq.f32.partialorder %v723, %v883
    %vm955 = vcmp.eq.f32.partialorder %v723, %v887
    %vm956 = vcmp.eq.f32.partialorder %v728, %v883
    %vm957 = vcmp.eq.f32.partialorder %v728, %v887
    %vm958 = vcmp.eq.f32.partialorder %v733, %v883
    %vm959 = vcmp.eq.f32.partialorder %v733, %v887
    %vm960 = vcmp.eq.f32.partialorder %v738, %v883
    %vm961 = vcmp.eq.f32.partialorder %v738, %v887
    %vm962 = vcmp.eq.f32.partialorder %v743, %v883
    %vm963 = vcmp.eq.f32.partialorder %v743, %v887
    %vm964 = vcmp.eq.f32.partialorder %v748, %v883
    %vm965 = vcmp.eq.f32.partialorder %v748, %v887
    %vm966 = vcmp.eq.f32.partialorder %v753, %v883
    %vm967 = vcmp.eq.f32.partialorder %v753, %v887
    %vm968 = vcmp.eq.f32.partialorder %v758, %v883
    %vm969 = vcmp.eq.f32.partialorder %v758, %v887
    %vm970 = vcmp.eq.f32.partialorder %v763, %v883
    %vm971 = vcmp.eq.f32.partialorder %v763, %v887
    %vm972 = vcmp.eq.f32.partialorder %v768, %v883
    %vm973 = vcmp.eq.f32.partialorder %v768, %v887
    %vm974 = vcmp.eq.f32.partialorder %v773, %v883
    %vm975 = vcmp.eq.f32.partialorder %v773, %v887
    %vm976 = vcmp.eq.f32.partialorder %v778, %v883
    %vm977 = vcmp.eq.f32.partialorder %v778, %v887
    %vm978 = vcmp.eq.f32.partialorder %v783, %v883
    %vm979 = vcmp.eq.f32.partialorder %v783, %v887
    %vm980 = vcmp.eq.f32.partialorder %v788, %v883
    %vm981 = vcmp.eq.f32.partialorder %v788, %v887
    %vm982 = vcmp.eq.f32.partialorder %v793, %v883
    %vm983 = vcmp.eq.f32.partialorder %v793, %v887
    %vm984 = vcmp.eq.f32.partialorder %v798, %v883
    %vm985 = vcmp.eq.f32.partialorder %v798, %v887
    %vm986 = vcmp.eq.f32.partialorder %v803, %v883
    %vm987 = vcmp.eq.f32.partialorder %v803, %v887
    %vm988 = vcmp.eq.f32.partialorder %v808, %v883
    %vm989 = vcmp.eq.f32.partialorder %v808, %v887
    %vm990 = vcmp.eq.f32.partialorder %v813, %v883
    %vm991 = vcmp.eq.f32.partialorder %v813, %v887
    %vm992 = vcmp.eq.f32.partialorder %v818, %v883
    %vm993 = vcmp.eq.f32.partialorder %v818, %v887
    %vm994 = vcmp.eq.f32.partialorder %v823, %v883
    %vm995 = vcmp.eq.f32.partialorder %v823, %v887
    %vm996 = vcmp.eq.f32.partialorder %v828, %v883
    %vm997 = vcmp.eq.f32.partialorder %v828, %v887
    %vm998 = vcmp.eq.f32.partialorder %v833, %v883
    %vm999 = vcmp.eq.f32.partialorder %v833, %v887
    %vm1000 = vcmp.eq.f32.partialorder %v838, %v883
    %vm1001 = vcmp.eq.f32.partialorder %v838, %v887
    %vm1002 = vcmp.eq.f32.partialorder %v843, %v883
    %vm1003 = vcmp.eq.f32.partialorder %v843, %v887
    %vm1004 = vcmp.eq.f32.partialorder %v848, %v883
    %vm1005 = vcmp.eq.f32.partialorder %v848, %v887
    %vm1006 = vcmp.eq.f32.partialorder %v853, %v883
    %vm1007 = vcmp.eq.f32.partialorder %v853, %v887
    %vm1008 = vcmp.eq.f32.partialorder %v858, %v883
    %vm1009 = vcmp.eq.f32.partialorder %v858, %v887
    %vm1010 = vcmp.eq.f32.partialorder %v863, %v883
    %vm1011 = vcmp.eq.f32.partialorder %v863, %v887
    %vm1012 = vcmp.eq.f32.partialorder %v868, %v883
    %vm1013 = vcmp.eq.f32.partialorder %v868, %v887
    %vm1014 = vcmp.eq.f32.partialorder %v873, %v883
    %vm1015 = vcmp.eq.f32.partialorder %v873, %v887
    %vm1016 = vcmp.eq.f32.partialorder %v878, %v883
    %vm1017 = vcmp.eq.f32.partialorder %v878, %v887
    %vm1018 = vcmp.lt.s32.totalorder %v688, %v622
    %vm1019 = vcmp.lt.s32.totalorder %v688, %v623
    %vm1020 = vcmp.lt.s32.totalorder %v689, %v622
    %vm1021 = vcmp.lt.s32.totalorder %v689, %v623
    %vm1022 = vcmp.lt.s32.totalorder %v690, %v622
    %vm1023 = vcmp.lt.s32.totalorder %v690, %v623
    %vm1024 = vcmp.lt.s32.totalorder %v691, %v622
    %vm1025 = vcmp.lt.s32.totalorder %v691, %v623
    %vm1026 = vcmp.lt.s32.totalorder %v692, %v622
    %vm1027 = vcmp.lt.s32.totalorder %v692, %v623
    %vm1028 = vcmp.lt.s32.totalorder %v693, %v622
    %vm1029 = vcmp.lt.s32.totalorder %v693, %v623
    %vm1030 = vcmp.lt.s32.totalorder %v694, %v622
    %vm1031 = vcmp.lt.s32.totalorder %v694, %v623
    %vm1032 = vcmp.lt.s32.totalorder %v695, %v622
    %vm1033 = vcmp.lt.s32.totalorder %v695, %v623
    %vm1034 = vcmp.lt.s32.totalorder %v696, %v622
    %vm1035 = vcmp.lt.s32.totalorder %v696, %v623
    %vm1036 = vcmp.lt.s32.totalorder %v697, %v622
    %vm1037 = vcmp.lt.s32.totalorder %v697, %v623
    %vm1038 = vcmp.lt.s32.totalorder %v698, %v622
    %vm1039 = vcmp.lt.s32.totalorder %v698, %v623
    %vm1040 = vcmp.lt.s32.totalorder %v699, %v622
    %vm1041 = vcmp.lt.s32.totalorder %v699, %v623
    %vm1042 = vcmp.lt.s32.totalorder %v700, %v622
    %vm1043 = vcmp.lt.s32.totalorder %v700, %v623
    %vm1044 = vcmp.lt.s32.totalorder %v701, %v622
    %vm1045 = vcmp.lt.s32.totalorder %v701, %v623
    %vm1046 = vcmp.lt.s32.totalorder %v702, %v622
    %vm1047 = vcmp.lt.s32.totalorder %v702, %v623
    %vm1048 = vcmp.lt.s32.totalorder %v703, %v622
    %vm1049 = vcmp.lt.s32.totalorder %v703, %v623
    %vm1050 = vcmp.lt.s32.totalorder %v704, %v622
    %vm1051 = vcmp.lt.s32.totalorder %v704, %v623
    %vm1052 = vcmp.lt.s32.totalorder %v705, %v622
    %vm1053 = vcmp.lt.s32.totalorder %v705, %v623
    %vm1054 = vcmp.lt.s32.totalorder %v706, %v622
    %vm1055 = vcmp.lt.s32.totalorder %v706, %v623
    %vm1056 = vcmp.lt.s32.totalorder %v707, %v622
    %vm1057 = vcmp.lt.s32.totalorder %v707, %v623
    %vm1058 = vcmp.lt.s32.totalorder %v708, %v622
    %vm1059 = vcmp.lt.s32.totalorder %v708, %v623
    %vm1060 = vcmp.lt.s32.totalorder %v709, %v622
    %vm1061 = vcmp.lt.s32.totalorder %v709, %v623
    %vm1062 = vcmp.lt.s32.totalorder %v710, %v622
    %vm1063 = vcmp.lt.s32.totalorder %v710, %v623
    %vm1064 = vcmp.lt.s32.totalorder %v711, %v622
    %vm1065 = vcmp.lt.s32.totalorder %v711, %v623
    %vm1066 = vcmp.lt.s32.totalorder %v712, %v622
    %vm1067 = vcmp.lt.s32.totalorder %v712, %v623
    %vm1068 = vcmp.lt.s32.totalorder %v713, %v622
    %vm1069 = vcmp.lt.s32.totalorder %v713, %v623
    %vm1070 = vcmp.lt.s32.totalorder %v714, %v622
    %vm1071 = vcmp.lt.s32.totalorder %v714, %v623
    %vm1072 = vcmp.lt.s32.totalorder %v715, %v622
    %vm1073 = vcmp.lt.s32.totalorder %v715, %v623
    %vm1074 = vcmp.lt.s32.totalorder %v716, %v622
    %vm1075 = vcmp.lt.s32.totalorder %v716, %v623
    %vm1076 = vcmp.lt.s32.totalorder %v717, %v622
    %vm1077 = vcmp.lt.s32.totalorder %v717, %v623
    %vm1078 = vcmp.lt.s32.totalorder %v718, %v622
    %vm1079 = vcmp.lt.s32.totalorder %v718, %v623
    %vm1080 = vcmp.lt.s32.totalorder %v719, %v622
    %vm1081 = vcmp.lt.s32.totalorder %v719, %v623
    %vm1082 = vmand %vm954, %vm1018
    %vm1083 = vmand %vm955, %vm1019
    %vm1084 = vmand %vm956, %vm1020
    %vm1085 = vmand %vm957, %vm1021
    %vm1086 = vmand %vm958, %vm1022
    %vm1087 = vmand %vm959, %vm1023
    %vm1088 = vmand %vm960, %vm1024
    %vm1089 = vmand %vm961, %vm1025
    %vm1090 = vmand %vm962, %vm1026
    %vm1091 = vmand %vm963, %vm1027
    %vm1092 = vmand %vm964, %vm1028
    %vm1093 = vmand %vm965, %vm1029
    %vm1094 = vmand %vm966, %vm1030
    %vm1095 = vmand %vm967, %vm1031
    %vm1096 = vmand %vm968, %vm1032
    %vm1097 = vmand %vm969, %vm1033
    %vm1098 = vmand %vm970, %vm1034
    %vm1099 = vmand %vm971, %vm1035
    %vm1100 = vmand %vm972, %vm1036
    %vm1101 = vmand %vm973, %vm1037
    %vm1102 = vmand %vm974, %vm1038
    %vm1103 = vmand %vm975, %vm1039
    %vm1104 = vmand %vm976, %vm1040
    %vm1105 = vmand %vm977, %vm1041
    %vm1106 = vmand %vm978, %vm1042
    %vm1107 = vmand %vm979, %vm1043
    %vm1108 = vmand %vm980, %vm1044
    %vm1109 = vmand %vm981, %vm1045
    %vm1110 = vmand %vm982, %vm1046
    %vm1111 = vmand %vm983, %vm1047
    %vm1112 = vmand %vm984, %vm1048
    %vm1113 = vmand %vm985, %vm1049
    %vm1114 = vmand %vm986, %vm1050
    %vm1115 = vmand %vm987, %vm1051
    %vm1116 = vmand %vm988, %vm1052
    %vm1117 = vmand %vm989, %vm1053
    %vm1118 = vmand %vm990, %vm1054
    %vm1119 = vmand %vm991, %vm1055
    %vm1120 = vmand %vm992, %vm1056
    %vm1121 = vmand %vm993, %vm1057
    %vm1122 = vmand %vm994, %vm1058
    %vm1123 = vmand %vm995, %vm1059
    %vm1124 = vmand %vm996, %vm1060
    %vm1125 = vmand %vm997, %vm1061
    %vm1126 = vmand %vm998, %vm1062
    %vm1127 = vmand %vm999, %vm1063
    %vm1128 = vmand %vm1000, %vm1064
    %vm1129 = vmand %vm1001, %vm1065
    %vm1130 = vmand %vm1002, %vm1066
    %vm1131 = vmand %vm1003, %vm1067
    %vm1132 = vmand %vm1004, %vm1068
    %vm1133 = vmand %vm1005, %vm1069
    %vm1134 = vmand %vm1006, %vm1070
    %vm1135 = vmand %vm1007, %vm1071
    %vm1136 = vmand %vm1008, %vm1072
    %vm1137 = vmand %vm1009, %vm1073
    %vm1138 = vmand %vm1010, %vm1074
    %vm1139 = vmand %vm1011, %vm1075
    %vm1140 = vmand %vm1012, %vm1076
    %vm1141 = vmand %vm1013, %vm1077
    %vm1142 = vmand %vm1014, %vm1078
    %vm1143 = vmand %vm1015, %vm1079
    %vm1144 = vmand %vm1016, %vm1080
    %vm1145 = vmand %vm1017, %vm1081
    %vm1146 = vmor %vm890, %vm1082
    %vm1147 = vmor %vm891, %vm1083
    %vm1148 = vmor %vm892, %vm1084
    %vm1149 = vmor %vm893, %vm1085
    %vm1150 = vmor %vm894, %vm1086
    %vm1151 = vmor %vm895, %vm1087
    %vm1152 = vmor %vm896, %vm1088
    %vm1153 = vmor %vm897, %vm1089
    %vm1154 = vmor %vm898, %vm1090
    %vm1155 = vmor %vm899, %vm1091
    %vm1156 = vmor %vm900, %vm1092
    %vm1157 = vmor %vm901, %vm1093
    %vm1158 = vmor %vm902, %vm1094
    %vm1159 = vmor %vm903, %vm1095
    %vm1160 = vmor %vm904, %vm1096
    %vm1161 = vmor %vm905, %vm1097
    %vm1162 = vmor %vm906, %vm1098
    %vm1163 = vmor %vm907, %vm1099
    %vm1164 = vmor %vm908, %vm1100
    %vm1165 = vmor %vm909, %vm1101
    %vm1166 = vmor %vm910, %vm1102
    %vm1167 = vmor %vm911, %vm1103
    %vm1168 = vmor %vm912, %vm1104
    %vm1169 = vmor %vm913, %vm1105
    %vm1170 = vmor %vm914, %vm1106
    %vm1171 = vmor %vm915, %vm1107
    %vm1172 = vmor %vm916, %vm1108
    %vm1173 = vmor %vm917, %vm1109
    %vm1174 = vmor %vm918, %vm1110
    %vm1175 = vmor %vm919, %vm1111
    %vm1176 = vmor %vm920, %vm1112
    %vm1177 = vmor %vm921, %vm1113
    %vm1178 = vmor %vm922, %vm1114
    %vm1179 = vmor %vm923, %vm1115
    %vm1180 = vmor %vm924, %vm1116
    %vm1181 = vmor %vm925, %vm1117
    %vm1182 = vmor %vm926, %vm1118
    %vm1183 = vmor %vm927, %vm1119
    %vm1184 = vmor %vm928, %vm1120
    %vm1185 = vmor %vm929, %vm1121
    %vm1186 = vmor %vm930, %vm1122
    %vm1187 = vmor %vm931, %vm1123
    %vm1188 = vmor %vm932, %vm1124
    %vm1189 = vmor %vm933, %vm1125
    %vm1190 = vmor %vm934, %vm1126
    %vm1191 = vmor %vm935, %vm1127
    %vm1192 = vmor %vm936, %vm1128
    %vm1193 = vmor %vm937, %vm1129
    %vm1194 = vmor %vm938, %vm1130
    %vm1195 = vmor %vm939, %vm1131
    %vm1196 = vmor %vm940, %vm1132
    %vm1197 = vmor %vm941, %vm1133
    %vm1198 = vmor %vm942, %vm1134
    %vm1199 = vmor %vm943, %vm1135
    %vm1200 = vmor %vm944, %vm1136
    %vm1201 = vmor %vm945, %vm1137
    %vm1202 = vmor %vm946, %vm1138
    %vm1203 = vmor %vm947, %vm1139
    %vm1204 = vmor %vm948, %vm1140
    %vm1205 = vmor %vm949, %vm1141
    %vm1206 = vmor %vm950, %vm1142
    %vm1207 = vmor %vm951, %vm1143
    %vm1208 = vmor %vm952, %vm1144
    %vm1209 = vmor %vm953, %vm1145
    %v1210 = vsel %vm1146, 1, 0
    %v1211 = vsel %vm1147, 1, 0
    %v1212 = vsel %vm1148, 1, 0
    %v1213 = vsel %vm1149, 1, 0
    %v1214 = vsel %vm1150, 1, 0
    %v1215 = vsel %vm1151, 1, 0
    %v1216 = vsel %vm1152, 1, 0
    %v1217 = vsel %vm1153, 1, 0
    %v1218 = vsel %vm1154, 1, 0
    %v1219 = vsel %vm1155, 1, 0
    %v1220 = vsel %vm1156, 1, 0
    %v1221 = vsel %vm1157, 1, 0
    %v1222 = vsel %vm1158, 1, 0
    %v1223 = vsel %vm1159, 1, 0
    %v1224 = vsel %vm1160, 1, 0
    %v1225 = vsel %vm1161, 1, 0
    %v1226 = vsel %vm1162, 1, 0
    %v1227 = vsel %vm1163, 1, 0
    %v1228 = vsel %vm1164, 1, 0
    %v1229 = vsel %vm1165, 1, 0
    %v1230 = vsel %vm1166, 1, 0
    %v1231 = vsel %vm1167, 1, 0
    %v1232 = vsel %vm1168, 1, 0
    %v1233 = vsel %vm1169, 1, 0
    %v1234 = vsel %vm1170, 1, 0
    %v1235 = vsel %vm1171, 1, 0
    %v1236 = vsel %vm1172, 1, 0
    %v1237 = vsel %vm1173, 1, 0
    %v1238 = vsel %vm1174, 1, 0
    %v1239 = vsel %vm1175, 1, 0
    %v1240 = vsel %vm1176, 1, 0
    %v1241 = vsel %vm1177, 1, 0
    %v1242 = vsel %vm1178, 1, 0
    %v1243 = vsel %vm1179, 1, 0
    %v1244 = vsel %vm1180, 1, 0
    %v1245 = vsel %vm1181, 1, 0
    %v1246 = vsel %vm1182, 1, 0
    %v1247 = vsel %vm1183, 1, 0
    %v1248 = vsel %vm1184, 1, 0
    %v1249 = vsel %vm1185, 1, 0
    %v1250 = vsel %vm1186, 1, 0
    %v1251 = vsel %vm1187, 1, 0
    %v1252 = vsel %vm1188, 1, 0
    %v1253 = vsel %vm1189, 1, 0
    %v1254 = vsel %vm1190, 1, 0
    %v1255 = vsel %vm1191, 1, 0
    %v1256 = vsel %vm1192, 1, 0
    %v1257 = vsel %vm1193, 1, 0
    %v1258 = vsel %vm1194, 1, 0
    %v1259 = vsel %vm1195, 1, 0
    %v1260 = vsel %vm1196, 1, 0
    %v1261 = vsel %vm1197, 1, 0
    %v1262 = vsel %vm1198, 1, 0
    %v1263 = vsel %vm1199, 1, 0
    %v1264 = vsel %vm1200, 1, 0
    %v1265 = vsel %vm1201, 1, 0
    %v1266 = vsel %vm1202, 1, 0
    %v1267 = vsel %vm1203, 1, 0
    %v1268 = vsel %vm1204, 1, 0
    %v1269 = vsel %vm1205, 1, 0
    %v1270 = vsel %vm1206, 1, 0
    %v1271 = vsel %vm1207, 1, 0
    %v1272 = vsel %vm1208, 1, 0
    %v1273 = vsel %vm1209, 1, 0
    %v1274 = vcvt.s32.f32 %v1210
    %v1275 = vcvt.s32.f32 %v1211
    %v1276 = vcvt.s32.f32 %v1212
    %v1277 = vcvt.s32.f32 %v1213
    %v1278 = vcvt.s32.f32 %v1214
    %v1279 = vcvt.s32.f32 %v1215
    %v1280 = vcvt.s32.f32 %v1216
    %v1281 = vcvt.s32.f32 %v1217
    %v1282 = vcvt.s32.f32 %v1218
    %v1283 = vcvt.s32.f32 %v1219
    %v1284 = vcvt.s32.f32 %v1220
    %v1285 = vcvt.s32.f32 %v1221
    %v1286 = vcvt.s32.f32 %v1222
    %v1287 = vcvt.s32.f32 %v1223
    %v1288 = vcvt.s32.f32 %v1224
    %v1289 = vcvt.s32.f32 %v1225
    %v1290 = vcvt.s32.f32 %v1226
    %v1291 = vcvt.s32.f32 %v1227
    %v1292 = vcvt.s32.f32 %v1228
    %v1293 = vcvt.s32.f32 %v1229
    %v1294 = vcvt.s32.f32 %v1230
    %v1295 = vcvt.s32.f32 %v1231
    %v1296 = vcvt.s32.f32 %v1232
    %v1297 = vcvt.s32.f32 %v1233
    %v1298 = vcvt.s32.f32 %v1234
    %v1299 = vcvt.s32.f32 %v1235
    %v1300 = vcvt.s32.f32 %v1236
    %v1301 = vcvt.s32.f32 %v1237
    %v1302 = vcvt.s32.f32 %v1238
    %v1303 = vcvt.s32.f32 %v1239
    %v1304 = vcvt.s32.f32 %v1240
    %v1305 = vcvt.s32.f32 %v1241
    %v1306 = vcvt.s32.f32 %v1242
    %v1307 = vcvt.s32.f32 %v1243
    %v1308 = vcvt.s32.f32 %v1244
    %v1309 = vcvt.s32.f32 %v1245
    %v1310 = vcvt.s32.f32 %v1246
    %v1311 = vcvt.s32.f32 %v1247
    %v1312 = vcvt.s32.f32 %v1248
    %v1313 = vcvt.s32.f32 %v1249
    %v1314 = vcvt.s32.f32 %v1250
    %v1315 = vcvt.s32.f32 %v1251
    %v1316 = vcvt.s32.f32 %v1252
    %v1317 = vcvt.s32.f32 %v1253
    %v1318 = vcvt.s32.f32 %v1254
    %v1319 = vcvt.s32.f32 %v1255
    %v1320 = vcvt.s32.f32 %v1256
    %v1321 = vcvt.s32.f32 %v1257
    %v1322 = vcvt.s32.f32 %v1258
    %v1323 = vcvt.s32.f32 %v1259
    %v1324 = vcvt.s32.f32 %v1260
    %v1325 = vcvt.s32.f32 %v1261
    %v1326 = vcvt.s32.f32 %v1262
    %v1327 = vcvt.s32.f32 %v1263
    %v1328 = vcvt.s32.f32 %v1264
    %v1329 = vcvt.s32.f32 %v1265
    %v1330 = vcvt.s32.f32 %v1266
    %v1331 = vcvt.s32.f32 %v1267
    %v1332 = vcvt.s32.f32 %v1268
    %v1333 = vcvt.s32.f32 %v1269
    %v1334 = vcvt.s32.f32 %v1270
    %v1335 = vcvt.s32.f32 %v1271
    %v1336 = vcvt.s32.f32 %v1272
    %v1337 = vcvt.s32.f32 %v1273
    %v1338 = vpack.c.bf16 %v1276, %v1274
    %v1339 = vpack.c.bf16 %v1277, %v1275
    %v1340 = vpack.c.bf16 %v1280, %v1278
    %v1341 = vpack.c.bf16 %v1281, %v1279
    %v1342 = vpack.c.bf16 %v1284, %v1282
    %v1343 = vpack.c.bf16 %v1285, %v1283
    %v1344 = vpack.c.bf16 %v1288, %v1286
    %v1345 = vpack.c.bf16 %v1289, %v1287
    %v1346 = vpack.c.bf16 %v1292, %v1290
    %v1347 = vpack.c.bf16 %v1293, %v1291
    %v1348 = vpack.c.bf16 %v1296, %v1294
    %v1349 = vpack.c.bf16 %v1297, %v1295
    %v1350 = vpack.c.bf16 %v1300, %v1298
    %v1351 = vpack.c.bf16 %v1301, %v1299
    %v1352 = vpack.c.bf16 %v1304, %v1302
    %v1353 = vpack.c.bf16 %v1305, %v1303
    %v1354 = vpack.c.bf16 %v1308, %v1306
    %v1355 = vpack.c.bf16 %v1309, %v1307
    %v1356 = vpack.c.bf16 %v1312, %v1310
    %v1357 = vpack.c.bf16 %v1313, %v1311
    %v1358 = vpack.c.bf16 %v1316, %v1314
    %v1359 = vpack.c.bf16 %v1317, %v1315
    %v1360 = vpack.c.bf16 %v1320, %v1318
    %v1361 = vpack.c.bf16 %v1321, %v1319
    %v1362 = vpack.c.bf16 %v1324, %v1322
    %v1363 = vpack.c.bf16 %v1325, %v1323
    %v1364 = vpack.c.bf16 %v1328, %v1326
    %v1365 = vpack.c.bf16 %v1329, %v1327
    %v1366 = vpack.c.bf16 %v1332, %v1330
    %v1367 = vpack.c.bf16 %v1333, %v1331
    %v1368 = vpack.c.bf16 %v1336, %v1334
    %v1369 = vpack.c.bf16 %v1337, %v1335
    %1370 = vmatprep.subr.bf16.mxu0 %v1353
    %1371 = vmatpush1.bf16.msra.mxu0 %v1352
    %1372 = vmatprep.subr.bf16.mxu0 %v1351
    %1373 = vmatpush1.bf16.msra.mxu0 %v1350
    %1374 = vmatprep.subr.bf16.mxu0 %v1349
    %1375 = vmatpush1.bf16.msra.mxu0 %v1348
    %1376 = vmatprep.subr.bf16.mxu0 %v1347
    %1377 = vmatpush1.bf16.msra.mxu0 %v1346
    %1378 = vmatprep.subr.bf16.mxu0 %v1345
    %1379 = vmatpush1.bf16.msra.mxu0 %v1344
    %1380 = vmatprep.subr.bf16.mxu0 %v1343
    %1381 = vmatpush1.bf16.msra.mxu0 %v1342
    %1382 = vmatprep.subr.bf16.mxu0 %v1341
    %1383 = vmatpush1.bf16.msra.mxu0 %v1340
    %1384 = vmatprep.subr.bf16.mxu0 %v1339
    %1385 = vmatpush1.bf16.msra.mxu0 %v1338
    %1386 = vmatprep.subr.bf16.mxu0 %v1369
    %1387 = vmatpush2.bf16.msra.mxu0 %v1368
    %1388 = vmatprep.subr.bf16.mxu0 %v1367
    %1389 = vmatpush2.bf16.msra.mxu0 %v1366
    %1390 = vmatprep.subr.bf16.mxu0 %v1365
    %1391 = vmatpush2.bf16.msra.mxu0 %v1364
    %1392 = vmatprep.subr.bf16.mxu0 %v1363
    %1393 = vmatpush2.bf16.msra.mxu0 %v1362
    %1394 = vmatprep.subr.bf16.mxu0 %v1361
    %1395 = vmatpush2.bf16.msra.mxu0 %v1360
    %1396 = vmatprep.subr.bf16.mxu0 %v1359
    %1397 = vmatpush2.bf16.msra.mxu0 %v1358
    %1398 = vmatprep.subr.bf16.mxu0 %v1357
    %1399 = vmatpush2.bf16.msra.mxu0 %v1356
    %1400 = vmatprep.subr.bf16.mxu0 %v1355
    %1401 = vmatpush2.bf16.msra.mxu0 %v1354
    %1402 = vmatprep.mubr.bf16.mxu0 1065369472
    %1403 = vmatmul.mubr.bf16.gmra.mxu0 1065369472
    %v1404 = vpop.f32.mrf.mxu0
    %v1405 = vadd.f32 0.0, %v1404
    %v1406 = vpop.f32.mrf.mxu0
    %v1407 = vadd.f32 0.0, %v1406
    %v1408 = vpop.f32.mrf.mxu0
    %v1409 = vpop.f32.mrf.mxu0
    %1410 = vdwg.mxu0
    %v1411 = vadd.f32 %v1405, 0.0
    %v1412 = vadd.f32 %v1407, 0.0
    %v1413 = vmul.f32 %v251, 3.0
    %v1414 = vmin.f32 %v1413, 256.0
    %vm1415 = vcmp.lt.f32.partialorder %v1411, %v1414
    %vm1416 = vcmp.lt.f32.partialorder %v1412, %v1414
    %v1417 = vsel %vm1415, 1, 0
    %v1418 = vsel %vm1416, 1, 0
    %v1419 = vcvt.s32.f32 %v1417
    %v1420 = vcvt.s32.f32 %v1418
    %v1423 = vcombine.low %v1419, %v1420
    %v1425 = vunpack.c.l.s4 1966171168
    %v1426 = vunpack.c.0.s8 %v1425
    %v1427 = vlaneseq
    %v1428 = vshrl.u32 %v1427, 7
    %v1429 = vsub.s32 %v1426, %v1428
    %v1430 = vrot.slane %v1423, %v1429
    %v1432 = vunpack.c.l.s4 1966171168
    %v1433 = vunpack.c.0.s8 %v1432
    %v1434 = vlaneseq
    %v1435 = vshrl.u32 %v1434, 7
    %v1436 = vsub.s32 %v1433, %v1435
    %v1437 = vrot.slane %v1430, %v1436
    %v1439 = vadd.f32 %v222, %v1437
    %v1441 = vlaneseq
    %v1442 = vshrl.u32 %v1441, 7
    %v1443 = vsub.s32 0, %v1442
    %v1444 = vrot.slane %v1439, %v1443
    %v1445 = vlaneseq
    %v1446 = vshrl.u32 %v1445, 7
    %v1447 = vsub.s32 1, %v1446
    %v1448 = vrot.slane %v1439, %v1447
    %v1451 = vmul.f32 %v453, %v1444
    %v1452 = vmul.f32 %v454, %v1448
    %vm1453 = vcmask 1046534
    %v1454 = vsel %vm1453, %v1451, 0.0
    %v1455 = vsel %vm1453, %v1452, 0.0
    %v1456 = vadd.f32 %v1454, %v1455
    %1457 = vadd.xlane.f32.xlu0 %v1456
    %v1458 = vpop.xlane.xlu0 %1457
    %v1460 = vrot.slane %v1458, 6
    %v1462 = vadd.f32 %v321, %v1460
    %vm1463 = vcmp.gt.f32.partialorder %v251, 0.0
    %v1464 = vsel %vm1463, 1, 0
    %v1465 = vcvt.s32.f32 %v1464
    %v1466 = vmul.f32 %v1462, %v1465
    %v1467 = vmax.f32 %v251, 1e-06
    %v1468 = vrcp.pop %v1467
    %v1469 = vmul.f32 %v1466, %v1468
    %1471 = vset.pattern.permute.xlu0 0
    %1472 = vperm.xlu0 %1471, %v1469
    %v1473 = vpop.permute.xlu0 %1472
    %1475 = vst [vmem:[#allocation11] sm:$0x1] %v1473
    %v1476 = vld [vmem:[#allocation2] sm:$0xff]
    %v1477 = vld [vmem:[#allocation2 + $0x8] sm:$0xff]
    %v1478 = vld [vmem:[#allocation2 + $0x10] sm:$0xff]
    %v1479 = vld [vmem:[#allocation2 + $0x18] sm:$0xff]
    %v1480 = vld [vmem:[#allocation2 + $0x20] sm:$0xff]
    %v1481 = vld [vmem:[#allocation2 + $0x28] sm:$0xff]
    %v1482 = vld [vmem:[#allocation2 + $0x30] sm:$0xff]
    %v1483 = vld [vmem:[#allocation2 + $0x38] sm:$0xff]
    %v1484 = vld [vmem:[#allocation2 + $0x40] sm:$0xff]
    %v1485 = vld [vmem:[#allocation2 + $0x48] sm:$0xff]
    %v1486 = vld [vmem:[#allocation2 + $0x50] sm:$0xff]
    %v1487 = vld [vmem:[#allocation2 + $0x58] sm:$0xff]
    %v1488 = vld [vmem:[#allocation2 + $0x60] sm:$0xff]
    %v1489 = vld [vmem:[#allocation2 + $0x68] sm:$0xff]
    %v1490 = vld [vmem:[#allocation2 + $0x70] sm:$0xff]
    %v1491 = vld [vmem:[#allocation2 + $0x78] sm:$0xff]
    %v1492 = vld [vmem:[#allocation2 + $0x80] sm:$0xff]
    %v1493 = vld [vmem:[#allocation2 + $0x88] sm:$0xff]
    %v1494 = vld [vmem:[#allocation2 + $0x90] sm:$0xff]
    %v1495 = vld [vmem:[#allocation2 + $0x98] sm:$0xff]
    %v1496 = vld [vmem:[#allocation2 + $0xa0] sm:$0xff]
    %v1497 = vld [vmem:[#allocation2 + $0xa8] sm:$0xff]
    %v1498 = vld [vmem:[#allocation2 + $0xb0] sm:$0xff]
    %v1499 = vld [vmem:[#allocation2 + $0xb8] sm:$0xff]
    %v1500 = vld [vmem:[#allocation2 + $0xc0] sm:$0xff]
    %v1501 = vld [vmem:[#allocation2 + $0xc8] sm:$0xff]
    %v1502 = vld [vmem:[#allocation2 + $0xd0] sm:$0xff]
    %v1503 = vld [vmem:[#allocation2 + $0xd8] sm:$0xff]
    %v1504 = vld [vmem:[#allocation2 + $0xe0] sm:$0xff]
    %v1505 = vld [vmem:[#allocation2 + $0xe8] sm:$0xff]
    %v1506 = vld [vmem:[#allocation2 + $0xf0] sm:$0xff]
    %v1507 = vld [vmem:[#allocation2 + $0xf8] sm:$0xff]
    %1509 = vset.pattern.permute.xlu0 1
    %1510 = vperm.xlu0 %1509, %v1476
    %v1511 = vpop.permute.xlu0 %1510
    %1514 = vset.pattern.permute.xlu0 1
    %1515 = vperm.xlu0 %1514, %v1477
    %v1516 = vpop.permute.xlu0 %1515
    %1519 = vset.pattern.permute.xlu0 1
    %1520 = vperm.xlu0 %1519, %v1478
    %v1521 = vpop.permute.xlu0 %1520
    %1524 = vset.pattern.permute.xlu0 1
    %1525 = vperm.xlu0 %1524, %v1479
    %v1526 = vpop.permute.xlu0 %1525
    %1529 = vset.pattern.permute.xlu0 1
    %1530 = vperm.xlu0 %1529, %v1480
    %v1531 = vpop.permute.xlu0 %1530
    %1534 = vset.pattern.permute.xlu0 1
    %1535 = vperm.xlu0 %1534, %v1481
    %v1536 = vpop.permute.xlu0 %1535
    %1539 = vset.pattern.permute.xlu0 1
    %1540 = vperm.xlu0 %1539, %v1482
    %v1541 = vpop.permute.xlu0 %1540
    %1544 = vset.pattern.permute.xlu0 1
    %1545 = vperm.xlu0 %1544, %v1483
    %v1546 = vpop.permute.xlu0 %1545
    %1549 = vset.pattern.permute.xlu0 1
    %1550 = vperm.xlu0 %1549, %v1484
    %v1551 = vpop.permute.xlu0 %1550
    %1554 = vset.pattern.permute.xlu0 1
    %1555 = vperm.xlu0 %1554, %v1485
    %v1556 = vpop.permute.xlu0 %1555
    %1559 = vset.pattern.permute.xlu0 1
    %1560 = vperm.xlu0 %1559, %v1486
    %v1561 = vpop.permute.xlu0 %1560
    %1564 = vset.pattern.permute.xlu0 1
    %1565 = vperm.xlu0 %1564, %v1487
    %v1566 = vpop.permute.xlu0 %1565
    %1569 = vset.pattern.permute.xlu0 1
    %1570 = vperm.xlu0 %1569, %v1488
    %v1571 = vpop.permute.xlu0 %1570
    %1574 = vset.pattern.permute.xlu0 1
    %1575 = vperm.xlu0 %1574, %v1489
    %v1576 = vpop.permute.xlu0 %1575
    %1579 = vset.pattern.permute.xlu0 1
    %1580 = vperm.xlu0 %1579, %v1490
    %v1581 = vpop.permute.xlu0 %1580
    %1584 = vset.pattern.permute.xlu0 1
    %1585 = vperm.xlu0 %1584, %v1491
    %v1586 = vpop.permute.xlu0 %1585
    %1589 = vset.pattern.permute.xlu0 1
    %1590 = vperm.xlu0 %1589, %v1492
    %v1591 = vpop.permute.xlu0 %1590
    %1594 = vset.pattern.permute.xlu0 1
    %1595 = vperm.xlu0 %1594, %v1493
    %v1596 = vpop.permute.xlu0 %1595
    %1599 = vset.pattern.permute.xlu0 1
    %1600 = vperm.xlu0 %1599, %v1494
    %v1601 = vpop.permute.xlu0 %1600
    %1604 = vset.pattern.permute.xlu0 1
    %1605 = vperm.xlu0 %1604, %v1495
    %v1606 = vpop.permute.xlu0 %1605
    %1609 = vset.pattern.permute.xlu0 1
    %1610 = vperm.xlu0 %1609, %v1496
    %v1611 = vpop.permute.xlu0 %1610
    %1614 = vset.pattern.permute.xlu0 1
    %1615 = vperm.xlu0 %1614, %v1497
    %v1616 = vpop.permute.xlu0 %1615
    %1619 = vset.pattern.permute.xlu0 1
    %1620 = vperm.xlu0 %1619, %v1498
    %v1621 = vpop.permute.xlu0 %1620
    %1624 = vset.pattern.permute.xlu0 1
    %1625 = vperm.xlu0 %1624, %v1499
    %v1626 = vpop.permute.xlu0 %1625
    %1629 = vset.pattern.permute.xlu0 1
    %1630 = vperm.xlu0 %1629, %v1500
    %v1631 = vpop.permute.xlu0 %1630
    %1634 = vset.pattern.permute.xlu0 1
    %1635 = vperm.xlu0 %1634, %v1501
    %v1636 = vpop.permute.xlu0 %1635
    %1639 = vset.pattern.permute.xlu0 1
    %1640 = vperm.xlu0 %1639, %v1502
    %v1641 = vpop.permute.xlu0 %1640
    %1644 = vset.pattern.permute.xlu0 1
    %1645 = vperm.xlu0 %1644, %v1503
    %v1646 = vpop.permute.xlu0 %1645
    %1649 = vset.pattern.permute.xlu0 1
    %1650 = vperm.xlu0 %1649, %v1504
    %v1651 = vpop.permute.xlu0 %1650
    %1654 = vset.pattern.permute.xlu0 1
    %1655 = vperm.xlu0 %1654, %v1505
    %v1656 = vpop.permute.xlu0 %1655
    %1659 = vset.pattern.permute.xlu0 1
    %1660 = vperm.xlu0 %1659, %v1506
    %v1661 = vpop.permute.xlu0 %1660
    %1664 = vset.pattern.permute.xlu0 1
    %1665 = vperm.xlu0 %1664, %v1507
    %v1666 = vpop.permute.xlu0 %1665
    %v1668 = vlaneseq
    %v1669 = vshrl.u32 %v1668, 7
    %v1670 = vsub.s32 0, %v1669
    %v1671 = vrot.slane %v496, %v1670
    %v1672 = vlaneseq
    %v1673 = vshrl.u32 %v1672, 7
    %v1674 = vsub.s32 1, %v1673
    %v1675 = vrot.slane %v496, %v1674
    %vm1678 = vcmp.gt.f32.partialorder %v1511, %v1671
    %vm1679 = vcmp.gt.f32.partialorder %v1511, %v1675
    %vm1680 = vcmp.gt.f32.partialorder %v1516, %v1671
    %vm1681 = vcmp.gt.f32.partialorder %v1516, %v1675
    %vm1682 = vcmp.gt.f32.partialorder %v1521, %v1671
    %vm1683 = vcmp.gt.f32.partialorder %v1521, %v1675
    %vm1684 = vcmp.gt.f32.partialorder %v1526, %v1671
    %vm1685 = vcmp.gt.f32.partialorder %v1526, %v1675
    %vm1686 = vcmp.gt.f32.partialorder %v1531, %v1671
    %vm1687 = vcmp.gt.f32.partialorder %v1531, %v1675
    %vm1688 = vcmp.gt.f32.partialorder %v1536, %v1671
    %vm1689 = vcmp.gt.f32.partialorder %v1536, %v1675
    %vm1690 = vcmp.gt.f32.partialorder %v1541, %v1671
    %vm1691 = vcmp.gt.f32.partialorder %v1541, %v1675
    %vm1692 = vcmp.gt.f32.partialorder %v1546, %v1671
    %vm1693 = vcmp.gt.f32.partialorder %v1546, %v1675
    %vm1694 = vcmp.gt.f32.partialorder %v1551, %v1671
    %vm1695 = vcmp.gt.f32.partialorder %v1551, %v1675
    %vm1696 = vcmp.gt.f32.partialorder %v1556, %v1671
    %vm1697 = vcmp.gt.f32.partialorder %v1556, %v1675
    %vm1698 = vcmp.gt.f32.partialorder %v1561, %v1671
    %vm1699 = vcmp.gt.f32.partialorder %v1561, %v1675
    %vm1700 = vcmp.gt.f32.partialorder %v1566, %v1671
    %vm1701 = vcmp.gt.f32.partialorder %v1566, %v1675
    %vm1702 = vcmp.gt.f32.partialorder %v1571, %v1671
    %vm1703 = vcmp.gt.f32.partialorder %v1571, %v1675
    %vm1704 = vcmp.gt.f32.partialorder %v1576, %v1671
    %vm1705 = vcmp.gt.f32.partialorder %v1576, %v1675
    %vm1706 = vcmp.gt.f32.partialorder %v1581, %v1671
    %vm1707 = vcmp.gt.f32.partialorder %v1581, %v1675
    %vm1708 = vcmp.gt.f32.partialorder %v1586, %v1671
    %vm1709 = vcmp.gt.f32.partialorder %v1586, %v1675
    %vm1710 = vcmp.gt.f32.partialorder %v1591, %v1671
    %vm1711 = vcmp.gt.f32.partialorder %v1591, %v1675
    %vm1712 = vcmp.gt.f32.partialorder %v1596, %v1671
    %vm1713 = vcmp.gt.f32.partialorder %v1596, %v1675
    %vm1714 = vcmp.gt.f32.partialorder %v1601, %v1671
    %vm1715 = vcmp.gt.f32.partialorder %v1601, %v1675
    %vm1716 = vcmp.gt.f32.partialorder %v1606, %v1671
    %vm1717 = vcmp.gt.f32.partialorder %v1606, %v1675
    %vm1718 = vcmp.gt.f32.partialorder %v1611, %v1671
    %vm1719 = vcmp.gt.f32.partialorder %v1611, %v1675
    %vm1720 = vcmp.gt.f32.partialorder %v1616, %v1671
    %vm1721 = vcmp.gt.f32.partialorder %v1616, %v1675
    %vm1722 = vcmp.gt.f32.partialorder %v1621, %v1671
    %vm1723 = vcmp.gt.f32.partialorder %v1621, %v1675
    %vm1724 = vcmp.gt.f32.partialorder %v1626, %v1671
    %vm1725 = vcmp.gt.f32.partialorder %v1626, %v1675
    %vm1726 = vcmp.gt.f32.partialorder %v1631, %v1671
    %vm1727 = vcmp.gt.f32.partialorder %v1631, %v1675
    %vm1728 = vcmp.gt.f32.partialorder %v1636, %v1671
    %vm1729 = vcmp.gt.f32.partialorder %v1636, %v1675
    %vm1730 = vcmp.gt.f32.partialorder %v1641, %v1671
    %vm1731 = vcmp.gt.f32.partialorder %v1641, %v1675
    %vm1732 = vcmp.gt.f32.partialorder %v1646, %v1671
    %vm1733 = vcmp.gt.f32.partialorder %v1646, %v1675
    %vm1734 = vcmp.gt.f32.partialorder %v1651, %v1671
    %vm1735 = vcmp.gt.f32.partialorder %v1651, %v1675
    %vm1736 = vcmp.gt.f32.partialorder %v1656, %v1671
    %vm1737 = vcmp.gt.f32.partialorder %v1656, %v1675
    %vm1738 = vcmp.gt.f32.partialorder %v1661, %v1671
    %vm1739 = vcmp.gt.f32.partialorder %v1661, %v1675
    %vm1740 = vcmp.gt.f32.partialorder %v1666, %v1671
    %vm1741 = vcmp.gt.f32.partialorder %v1666, %v1675
    %vm1742 = vcmp.eq.f32.partialorder %v1511, %v1671
    %vm1743 = vcmp.eq.f32.partialorder %v1511, %v1675
    %vm1744 = vcmp.eq.f32.partialorder %v1516, %v1671
    %vm1745 = vcmp.eq.f32.partialorder %v1516, %v1675
    %vm1746 = vcmp.eq.f32.partialorder %v1521, %v1671
    %vm1747 = vcmp.eq.f32.partialorder %v1521, %v1675
    %vm1748 = vcmp.eq.f32.partialorder %v1526, %v1671
    %vm1749 = vcmp.eq.f32.partialorder %v1526, %v1675
    %vm1750 = vcmp.eq.f32.partialorder %v1531, %v1671
    %vm1751 = vcmp.eq.f32.partialorder %v1531, %v1675
    %vm1752 = vcmp.eq.f32.partialorder %v1536, %v1671
    %vm1753 = vcmp.eq.f32.partialorder %v1536, %v1675
    %vm1754 = vcmp.eq.f32.partialorder %v1541, %v1671
    %vm1755 = vcmp.eq.f32.partialorder %v1541, %v1675
    %vm1756 = vcmp.eq.f32.partialorder %v1546, %v1671
    %vm1757 = vcmp.eq.f32.partialorder %v1546, %v1675
    %vm1758 = vcmp.eq.f32.partialorder %v1551, %v1671
    %vm1759 = vcmp.eq.f32.partialorder %v1551, %v1675
    %vm1760 = vcmp.eq.f32.partialorder %v1556, %v1671
    %vm1761 = vcmp.eq.f32.partialorder %v1556, %v1675
    %vm1762 = vcmp.eq.f32.partialorder %v1561, %v1671
    %vm1763 = vcmp.eq.f32.partialorder %v1561, %v1675
    %vm1764 = vcmp.eq.f32.partialorder %v1566, %v1671
    %vm1765 = vcmp.eq.f32.partialorder %v1566, %v1675
    %vm1766 = vcmp.eq.f32.partialorder %v1571, %v1671
    %vm1767 = vcmp.eq.f32.partialorder %v1571, %v1675
    %vm1768 = vcmp.eq.f32.partialorder %v1576, %v1671
    %vm1769 = vcmp.eq.f32.partialorder %v1576, %v1675
    %vm1770 = vcmp.eq.f32.partialorder %v1581, %v1671
    %vm1771 = vcmp.eq.f32.partialorder %v1581, %v1675
    %vm1772 = vcmp.eq.f32.partialorder %v1586, %v1671
    %vm1773 = vcmp.eq.f32.partialorder %v1586, %v1675
    %vm1774 = vcmp.eq.f32.partialorder %v1591, %v1671
    %vm1775 = vcmp.eq.f32.partialorder %v1591, %v1675
    %vm1776 = vcmp.eq.f32.partialorder %v1596, %v1671
    %vm1777 = vcmp.eq.f32.partialorder %v1596, %v1675
    %vm1778 = vcmp.eq.f32.partialorder %v1601, %v1671
    %vm1779 = vcmp.eq.f32.partialorder %v1601, %v1675
    %vm1780 = vcmp.eq.f32.partialorder %v1606, %v1671
    %vm1781 = vcmp.eq.f32.partialorder %v1606, %v1675
    %vm1782 = vcmp.eq.f32.partialorder %v1611, %v1671
    %vm1783 = vcmp.eq.f32.partialorder %v1611, %v1675
    %vm1784 = vcmp.eq.f32.partialorder %v1616, %v1671
    %vm1785 = vcmp.eq.f32.partialorder %v1616, %v1675
    %vm1786 = vcmp.eq.f32.partialorder %v1621, %v1671
    %vm1787 = vcmp.eq.f32.partialorder %v1621, %v1675
    %vm1788 = vcmp.eq.f32.partialorder %v1626, %v1671
    %vm1789 = vcmp.eq.f32.partialorder %v1626, %v1675
    %vm1790 = vcmp.eq.f32.partialorder %v1631, %v1671
    %vm1791 = vcmp.eq.f32.partialorder %v1631, %v1675
    %vm1792 = vcmp.eq.f32.partialorder %v1636, %v1671
    %vm1793 = vcmp.eq.f32.partialorder %v1636, %v1675
    %vm1794 = vcmp.eq.f32.partialorder %v1641, %v1671
    %vm1795 = vcmp.eq.f32.partialorder %v1641, %v1675
    %vm1796 = vcmp.eq.f32.partialorder %v1646, %v1671
    %vm1797 = vcmp.eq.f32.partialorder %v1646, %v1675
    %vm1798 = vcmp.eq.f32.partialorder %v1651, %v1671
    %vm1799 = vcmp.eq.f32.partialorder %v1651, %v1675
    %vm1800 = vcmp.eq.f32.partialorder %v1656, %v1671
    %vm1801 = vcmp.eq.f32.partialorder %v1656, %v1675
    %vm1802 = vcmp.eq.f32.partialorder %v1661, %v1671
    %vm1803 = vcmp.eq.f32.partialorder %v1661, %v1675
    %vm1804 = vcmp.eq.f32.partialorder %v1666, %v1671
    %vm1805 = vcmp.eq.f32.partialorder %v1666, %v1675
    %vm1806 = vmand %vm1742, %vm1018
    %vm1807 = vmand %vm1743, %vm1019
    %vm1808 = vmand %vm1744, %vm1020
    %vm1809 = vmand %vm1745, %vm1021
    %vm1810 = vmand %vm1746, %vm1022
    %vm1811 = vmand %vm1747, %vm1023
    %vm1812 = vmand %vm1748, %vm1024
    %vm1813 = vmand %vm1749, %vm1025
    %vm1814 = vmand %vm1750, %vm1026
    %vm1815 = vmand %vm1751, %vm1027
    %vm1816 = vmand %vm1752, %vm1028
    %vm1817 = vmand %vm1753, %vm1029
    %vm1818 = vmand %vm1754, %vm1030
    %vm1819 = vmand %vm1755, %vm1031
    %vm1820 = vmand %vm1756, %vm1032
    %vm1821 = vmand %vm1757, %vm1033
    %vm1822 = vmand %vm1758, %vm1034
    %vm1823 = vmand %vm1759, %vm1035
    %vm1824 = vmand %vm1760, %vm1036
    %vm1825 = vmand %vm1761, %vm1037
    %vm1826 = vmand %vm1762, %vm1038
    %vm1827 = vmand %vm1763, %vm1039
    %vm1828 = vmand %vm1764, %vm1040
    %vm1829 = vmand %vm1765, %vm1041
    %vm1830 = vmand %vm1766, %vm1042
    %vm1831 = vmand %vm1767, %vm1043
    %vm1832 = vmand %vm1768, %vm1044
    %vm1833 = vmand %vm1769, %vm1045
    %vm1834 = vmand %vm1770, %vm1046
    %vm1835 = vmand %vm1771, %vm1047
    %vm1836 = vmand %vm1772, %vm1048
    %vm1837 = vmand %vm1773, %vm1049
    %vm1838 = vmand %vm1774, %vm1050
    %vm1839 = vmand %vm1775, %vm1051
    %vm1840 = vmand %vm1776, %vm1052
    %vm1841 = vmand %vm1777, %vm1053
    %vm1842 = vmand %vm1778, %vm1054
    %vm1843 = vmand %vm1779, %vm1055
    %vm1844 = vmand %vm1780, %vm1056
    %vm1845 = vmand %vm1781, %vm1057
    %vm1846 = vmand %vm1782, %vm1058
    %vm1847 = vmand %vm1783, %vm1059
    %vm1848 = vmand %vm1784, %vm1060
    %vm1849 = vmand %vm1785, %vm1061
    %vm1850 = vmand %vm1786, %vm1062
    %vm1851 = vmand %vm1787, %vm1063
    %vm1852 = vmand %vm1788, %vm1064
    %vm1853 = vmand %vm1789, %vm1065
    %vm1854 = vmand %vm1790, %vm1066
    %vm1855 = vmand %vm1791, %vm1067
    %vm1856 = vmand %vm1792, %vm1068
    %vm1857 = vmand %vm1793, %vm1069
    %vm1858 = vmand %vm1794, %vm1070
    %vm1859 = vmand %vm1795, %vm1071
    %vm1860 = vmand %vm1796, %vm1072
    %vm1861 = vmand %vm1797, %vm1073
    %vm1862 = vmand %vm1798, %vm1074
    %vm1863 = vmand %vm1799, %vm1075
    %vm1864 = vmand %vm1800, %vm1076
    %vm1865 = vmand %vm1801, %vm1077
    %vm1866 = vmand %vm1802, %vm1078
    %vm1867 = vmand %vm1803, %vm1079
    %vm1868 = vmand %vm1804, %vm1080
    %vm1869 = vmand %vm1805, %vm1081
    %vm1870 = vmor %vm1678, %vm1806
    %vm1871 = vmor %vm1679, %vm1807
    %vm1872 = vmor %vm1680, %vm1808
    %vm1873 = vmor %vm1681, %vm1809
    %vm1874 = vmor %vm1682, %vm1810
    %vm1875 = vmor %vm1683, %vm1811
    %vm1876 = vmor %vm1684, %vm1812
    %vm1877 = vmor %vm1685, %vm1813
    %vm1878 = vmor %vm1686, %vm1814
    %vm1879 = vmor %vm1687, %vm1815
    %vm1880 = vmor %vm1688, %vm1816
    %vm1881 = vmor %vm1689, %vm1817
    %vm1882 = vmor %vm1690, %vm1818
    %vm1883 = vmor %vm1691, %vm1819
    %vm1884 = vmor %vm1692, %vm1820
    %vm1885 = vmor %vm1693, %vm1821
    %vm1886 = vmor %vm1694, %vm1822
    %vm1887 = vmor %vm1695, %vm1823
    %vm1888 = vmor %vm1696, %vm1824
    %vm1889 = vmor %vm1697, %vm1825
    %vm1890 = vmor %vm1698, %vm1826
    %vm1891 = vmor %vm1699, %vm1827
    %vm1892 = vmor %vm1700, %vm1828
    %vm1893 = vmor %vm1701, %vm1829
    %vm1894 = vmor %vm1702, %vm1830
    %vm1895 = vmor %vm1703, %vm1831
    %vm1896 = vmor %vm1704, %vm1832
    %vm1897 = vmor %vm1705, %vm1833
    %vm1898 = vmor %vm1706, %vm1834
    %vm1899 = vmor %vm1707, %vm1835
    %vm1900 = vmor %vm1708, %vm1836
    %vm1901 = vmor %vm1709, %vm1837
    %vm1902 = vmor %vm1710, %vm1838
    %vm1903 = vmor %vm1711, %vm1839
    %vm1904 = vmor %vm1712, %vm1840
    %vm1905 = vmor %vm1713, %vm1841
    %vm1906 = vmor %vm1714, %vm1842
    %vm1907 = vmor %vm1715, %vm1843
    %vm1908 = vmor %vm1716, %vm1844
    %vm1909 = vmor %vm1717, %vm1845
    %vm1910 = vmor %vm1718, %vm1846
    %vm1911 = vmor %vm1719, %vm1847
    %vm1912 = vmor %vm1720, %vm1848
    %vm1913 = vmor %vm1721, %vm1849
    %vm1914 = vmor %vm1722, %vm1850
    %vm1915 = vmor %vm1723, %vm1851
    %vm1916 = vmor %vm1724, %vm1852
    %vm1917 = vmor %vm1725, %vm1853
    %vm1918 = vmor %vm1726, %vm1854
    %vm1919 = vmor %vm1727, %vm1855
    %vm1920 = vmor %vm1728, %vm1856
    %vm1921 = vmor %vm1729, %vm1857
    %vm1922 = vmor %vm1730, %vm1858
    %vm1923 = vmor %vm1731, %vm1859
    %vm1924 = vmor %vm1732, %vm1860
    %vm1925 = vmor %vm1733, %vm1861
    %vm1926 = vmor %vm1734, %vm1862
    %vm1927 = vmor %vm1735, %vm1863
    %vm1928 = vmor %vm1736, %vm1864
    %vm1929 = vmor %vm1737, %vm1865
    %vm1930 = vmor %vm1738, %vm1866
    %vm1931 = vmor %vm1739, %vm1867
    %vm1932 = vmor %vm1740, %vm1868
    %vm1933 = vmor %vm1741, %vm1869
    %v1934 = vsel %vm1870, 1, 0
    %v1935 = vsel %vm1871, 1, 0
    %v1936 = vsel %vm1872, 1, 0
    %v1937 = vsel %vm1873, 1, 0
    %v1938 = vsel %vm1874, 1, 0
    %v1939 = vsel %vm1875, 1, 0
    %v1940 = vsel %vm1876, 1, 0
    %v1941 = vsel %vm1877, 1, 0
    %v1942 = vsel %vm1878, 1, 0
    %v1943 = vsel %vm1879, 1, 0
    %v1944 = vsel %vm1880, 1, 0
    %v1945 = vsel %vm1881, 1, 0
    %v1946 = vsel %vm1882, 1, 0
    %v1947 = vsel %vm1883, 1, 0
    %v1948 = vsel %vm1884, 1, 0
    %v1949 = vsel %vm1885, 1, 0
    %v1950 = vsel %vm1886, 1, 0
    %v1951 = vsel %vm1887, 1, 0
    %v1952 = vsel %vm1888, 1, 0
    %v1953 = vsel %vm1889, 1, 0
    %v1954 = vsel %vm1890, 1, 0
    %v1955 = vsel %vm1891, 1, 0
    %v1956 = vsel %vm1892, 1, 0
    %v1957 = vsel %vm1893, 1, 0
    %v1958 = vsel %vm1894, 1, 0
    %v1959 = vsel %vm1895, 1, 0
    %v1960 = vsel %vm1896, 1, 0
    %v1961 = vsel %vm1897, 1, 0
    %v1962 = vsel %vm1898, 1, 0
    %v1963 = vsel %vm1899, 1, 0
    %v1964 = vsel %vm1900, 1, 0
    %v1965 = vsel %vm1901, 1, 0
    %v1966 = vsel %vm1902, 1, 0
    %v1967 = vsel %vm1903, 1, 0
    %v1968 = vsel %vm1904, 1, 0
    %v1969 = vsel %vm1905, 1, 0
    %v1970 = vsel %vm1906, 1, 0
    %v1971 = vsel %vm1907, 1, 0
    %v1972 = vsel %vm1908, 1, 0
    %v1973 = vsel %vm1909, 1, 0
    %v1974 = vsel %vm1910, 1, 0
    %v1975 = vsel %vm1911, 1, 0
    %v1976 = vsel %vm1912, 1, 0
    %v1977 = vsel %vm1913, 1, 0
    %v1978 = vsel %vm1914, 1, 0
    %v1979 = vsel %vm1915, 1, 0
    %v1980 = vsel %vm1916, 1, 0
    %v1981 = vsel %vm1917, 1, 0
    %v1982 = vsel %vm1918, 1, 0
    %v1983 = vsel %vm1919, 1, 0
    %v1984 = vsel %vm1920, 1, 0
    %v1985 = vsel %vm1921, 1, 0
    %v1986 = vsel %vm1922, 1, 0
    %v1987 = vsel %vm1923, 1, 0
    %v1988 = vsel %vm1924, 1, 0
    %v1989 = vsel %vm1925, 1, 0
    %v1990 = vsel %vm1926, 1, 0
    %v1991 = vsel %vm1927, 1, 0
    %v1992 = vsel %vm1928, 1, 0
    %v1993 = vsel %vm1929, 1, 0
    %v1994 = vsel %vm1930, 1, 0
    %v1995 = vsel %vm1931, 1, 0
    %v1996 = vsel %vm1932, 1, 0
    %v1997 = vsel %vm1933, 1, 0
    %v1998 = vcvt.s32.f32 %v1934
    %v1999 = vcvt.s32.f32 %v1935
    %v2000 = vcvt.s32.f32 %v1936
    %v2001 = vcvt.s32.f32 %v1937
    %v2002 = vcvt.s32.f32 %v1938
    %v2003 = vcvt.s32.f32 %v1939
    %v2004 = vcvt.s32.f32 %v1940
    %v2005 = vcvt.s32.f32 %v1941
    %v2006 = vcvt.s32.f32 %v1942
    %v2007 = vcvt.s32.f32 %v1943
    %v2008 = vcvt.s32.f32 %v1944
    %v2009 = vcvt.s32.f32 %v1945
    %v2010 = vcvt.s32.f32 %v1946
    %v2011 = vcvt.s32.f32 %v1947
    %v2012 = vcvt.s32.f32 %v1948
    %v2013 = vcvt.s32.f32 %v1949
    %v2014 = vcvt.s32.f32 %v1950
    %v2015 = vcvt.s32.f32 %v1951
    %v2016 = vcvt.s32.f32 %v1952
    %v2017 = vcvt.s32.f32 %v1953
    %v2018 = vcvt.s32.f32 %v1954
    %v2019 = vcvt.s32.f32 %v1955
    %v2020 = vcvt.s32.f32 %v1956
    %v2021 = vcvt.s32.f32 %v1957
    %v2022 = vcvt.s32.f32 %v1958
    %v2023 = vcvt.s32.f32 %v1959
    %v2024 = vcvt.s32.f32 %v1960
    %v2025 = vcvt.s32.f32 %v1961
    %v2026 = vcvt.s32.f32 %v1962
    %v2027 = vcvt.s32.f32 %v1963
    %v2028 = vcvt.s32.f32 %v1964
    %v2029 = vcvt.s32.f32 %v1965
    %v2030 = vcvt.s32.f32 %v1966
    %v2031 = vcvt.s32.f32 %v1967
    %v2032 = vcvt.s32.f32 %v1968
    %v2033 = vcvt.s32.f32 %v1969
    %v2034 = vcvt.s32.f32 %v1970
    %v2035 = vcvt.s32.f32 %v1971
    %v2036 = vcvt.s32.f32 %v1972
    %v2037 = vcvt.s32.f32 %v1973
    %v2038 = vcvt.s32.f32 %v1974
    %v2039 = vcvt.s32.f32 %v1975
    %v2040 = vcvt.s32.f32 %v1976
    %v2041 = vcvt.s32.f32 %v1977
    %v2042 = vcvt.s32.f32 %v1978
    %v2043 = vcvt.s32.f32 %v1979
    %v2044 = vcvt.s32.f32 %v1980
    %v2045 = vcvt.s32.f32 %v1981
    %v2046 = vcvt.s32.f32 %v1982
    %v2047 = vcvt.s32.f32 %v1983
    %v2048 = vcvt.s32.f32 %v1984
    %v2049 = vcvt.s32.f32 %v1985
    %v2050 = vcvt.s32.f32 %v1986
    %v2051 = vcvt.s32.f32 %v1987
    %v2052 = vcvt.s32.f32 %v1988
    %v2053 = vcvt.s32.f32 %v1989
    %v2054 = vcvt.s32.f32 %v1990
    %v2055 = vcvt.s32.f32 %v1991
    %v2056 = vcvt.s32.f32 %v1992
    %v2057 = vcvt.s32.f32 %v1993
    %v2058 = vcvt.s32.f32 %v1994
    %v2059 = vcvt.s32.f32 %v1995
    %v2060 = vcvt.s32.f32 %v1996
    %v2061 = vcvt.s32.f32 %v1997
    %v2062 = vpack.c.bf16 %v2000, %v1998
    %v2063 = vpack.c.bf16 %v2001, %v1999
    %v2064 = vpack.c.bf16 %v2004, %v2002
    %v2065 = vpack.c.bf16 %v2005, %v2003
    %v2066 = vpack.c.bf16 %v2008, %v2006
    %v2067 = vpack.c.bf16 %v2009, %v2007
    %v2068 = vpack.c.bf16 %v2012, %v2010
    %v2069 = vpack.c.bf16 %v2013, %v2011
    %v2070 = vpack.c.bf16 %v2016, %v2014
    %v2071 = vpack.c.bf16 %v2017, %v2015
    %v2072 = vpack.c.bf16 %v2020, %v2018
    %v2073 = vpack.c.bf16 %v2021, %v2019
    %v2074 = vpack.c.bf16 %v2024, %v2022
    %v2075 = vpack.c.bf16 %v2025, %v2023
    %v2076 = vpack.c.bf16 %v2028, %v2026
    %v2077 = vpack.c.bf16 %v2029, %v2027
    %v2078 = vpack.c.bf16 %v2032, %v2030
    %v2079 = vpack.c.bf16 %v2033, %v2031
    %v2080 = vpack.c.bf16 %v2036, %v2034
    %v2081 = vpack.c.bf16 %v2037, %v2035
    %v2082 = vpack.c.bf16 %v2040, %v2038
    %v2083 = vpack.c.bf16 %v2041, %v2039
    %v2084 = vpack.c.bf16 %v2044, %v2042
    %v2085 = vpack.c.bf16 %v2045, %v2043
    %v2086 = vpack.c.bf16 %v2048, %v2046
    %v2087 = vpack.c.bf16 %v2049, %v2047
    %v2088 = vpack.c.bf16 %v2052, %v2050
    %v2089 = vpack.c.bf16 %v2053, %v2051
    %v2090 = vpack.c.bf16 %v2056, %v2054
    %v2091 = vpack.c.bf16 %v2057, %v2055
    %v2092 = vpack.c.bf16 %v2060, %v2058
    %v2093 = vpack.c.bf16 %v2061, %v2059
    %2094 = vmatprep.subr.bf16.mxu0 %v2077
    %2095 = vmatpush1.bf16.msra.mxu0 %v2076
    %2096 = vmatprep.subr.bf16.mxu0 %v2075
    %2097 = vmatpush1.bf16.msra.mxu0 %v2074
    %2098 = vmatprep.subr.bf16.mxu0 %v2073
    %2099 = vmatpush1.bf16.msra.mxu0 %v2072
    %2100 = vmatprep.subr.bf16.mxu0 %v2071
    %2101 = vmatpush1.bf16.msra.mxu0 %v2070
    %2102 = vmatprep.subr.bf16.mxu0 %v2069
    %2103 = vmatpush1.bf16.msra.mxu0 %v2068
    %2104 = vmatprep.subr.bf16.mxu0 %v2067
    %2105 = vmatpush1.bf16.msra.mxu0 %v2066
    %2106 = vmatprep.subr.bf16.mxu0 %v2065
    %2107 = vmatpush1.bf16.msra.mxu0 %v2064
    %2108 = vmatprep.subr.bf16.mxu0 %v2063
    %2109 = vmatpush1.bf16.msra.mxu0 %v2062
    %2110 = vmatprep.subr.bf16.mxu0 %v2093
    %2111 = vmatpush2.bf16.msra.mxu0 %v2092
    %2112 = vmatprep.subr.bf16.mxu0 %v2091
    %2113 = vmatpush2.bf16.msra.mxu0 %v2090
    %2114 = vmatprep.subr.bf16.mxu0 %v2089
    %2115 = vmatpush2.bf16.msra.mxu0 %v2088
    %2116 = vmatprep.subr.bf16.mxu0 %v2087
    %2117 = vmatpush2.bf16.msra.mxu0 %v2086
    %2118 = vmatprep.subr.bf16.mxu0 %v2085
    %2119 = vmatpush2.bf16.msra.mxu0 %v2084
    %2120 = vmatprep.subr.bf16.mxu0 %v2083
    %2121 = vmatpush2.bf16.msra.mxu0 %v2082
    %2122 = vmatprep.subr.bf16.mxu0 %v2081
    %2123 = vmatpush2.bf16.msra.mxu0 %v2080
    %2124 = vmatprep.subr.bf16.mxu0 %v2079
    %2125 = vmatpush2.bf16.msra.mxu0 %v2078
    %2126 = vmatprep.mubr.bf16.mxu0 1065369472
    %2127 = vmatmul.mubr.bf16.gmra.mxu0 1065369472
    %v2128 = vpop.f32.mrf.mxu0
    %v2129 = vadd.f32 0.0, %v2128
    %v2130 = vpop.f32.mrf.mxu0
    %v2131 = vadd.f32 0.0, %v2130
    %v2132 = vpop.f32.mrf.mxu0
    %v2133 = vpop.f32.mrf.mxu0
    %2134 = vdwg.mxu0
    %v2135 = vadd.f32 %v2129, 0.0
    %v2136 = vadd.f32 %v2131, 0.0
    %v2137 = vmul.f32 %v256, 3.0
    %v2138 = vmin.f32 %v2137, 256.0
    %vm2139 = vcmp.lt.f32.partialorder %v2135, %v2138
    %vm2140 = vcmp.lt.f32.partialorder %v2136, %v2138
    %v2141 = vsel %vm2139, 1, 0
    %v2142 = vsel %vm2140, 1, 0
    %v2143 = vcvt.s32.f32 %v2141
    %v2144 = vcvt.s32.f32 %v2142
    %v2147 = vcombine.low %v2143, %v2144
    %v2149 = vunpack.c.l.s4 1966171168
    %v2150 = vunpack.c.0.s8 %v2149
    %v2151 = vlaneseq
    %v2152 = vshrl.u32 %v2151, 7
    %v2153 = vsub.s32 %v2150, %v2152
    %v2154 = vrot.slane %v2147, %v2153
    %v2156 = vunpack.c.l.s4 1966171168
    %v2157 = vunpack.c.0.s8 %v2156
    %v2158 = vlaneseq
    %v2159 = vshrl.u32 %v2158, 7
    %v2160 = vsub.s32 %v2157, %v2159
    %v2161 = vrot.slane %v2154, %v2160
    %v2163 = vadd.f32 %v223, %v2161
    %v2165 = vlaneseq
    %v2166 = vshrl.u32 %v2165, 7
    %v2167 = vsub.s32 0, %v2166
    %v2168 = vrot.slane %v2163, %v2167
    %v2169 = vlaneseq
    %v2170 = vshrl.u32 %v2169, 7
    %v2171 = vsub.s32 1, %v2170
    %v2172 = vrot.slane %v2163, %v2171
    %v2175 = vmul.f32 %v455, %v2168
    %v2176 = vmul.f32 %v456, %v2172
    %v2177 = vsel %vm1453, %v2175, 0.0
    %v2178 = vsel %vm1453, %v2176, 0.0
    %v2179 = vadd.f32 %v2177, %v2178
    %2180 = vadd.xlane.f32.xlu0 %v2179
    %v2181 = vpop.xlane.xlu0 %2180
    %v2183 = vrot.slane %v2181, 6
    %v2185 = vadd.f32 %v326, %v2183
    %vm2186 = vcmp.gt.f32.partialorder %v256, 0.0
    %v2187 = vsel %vm2186, 1, 0
    %v2188 = vcvt.s32.f32 %v2187
    %v2189 = vmul.f32 %v2185, %v2188
    %v2190 = vmax.f32 %v256, 1e-06
    %v2191 = vrcp.pop %v2190
    %v2192 = vmul.f32 %v2189, %v2191
    %2194 = vset.pattern.permute.xlu0 0
    %2195 = vperm.xlu0 %2194, %v2192
    %v2196 = vpop.permute.xlu0 %2195
    %2198 = vst [vmem:[#allocation11 + $0x1] sm:$0x1] %v2196
    // Predicated region
    $region38: #{tpu_custom_call.1} parent=1 // pred_check
      _
    $region39: #{tpu_custom_call.1} parent=1 // pred_check_branch
      %2200 = sbr.rel (0) target = $region41
    $region40: #{tpu_custom_call.1} parent=1 // pred_region
      %s2202 = ssub.s32 32, 32
      %2203 = vsyncadd [#allocation5], %s2202
      %s2205 = sshll.u32 [#allocation11], 4
      %s2206 = int_to_ptr.vmem [resolvable:$true] %s2205
      %2208 = dma.vmem_to_hbm [thread:$0]  %s2206, 32, %s5, [#allocation5]
    $region41: #{tpu_custom_call.1} parent=1 // pred_fallthru
      _
    // Predicated region
    $region42: #{tpu_custom_call.1} parent=1 // pred_check
      _
    $region43: #{tpu_custom_call.1} parent=1 // pred_check_branch
      %2210 = sbr.rel (0) target = $region45
    $region44: #{tpu_custom_call.1} parent=1 // pred_region
      %2211 = dma.done [#allocation5], 32
    $region45: #{tpu_custom_call.1} parent=1 // pred_fallthru
      _
    %2212 = vsyncpa [#allocation4], 1
    %2213 = vsyncpa [#allocation7], 1
    %2214 = vsyncpa [#allocation10], 1
    %2215 = vsyncpa [#allocation5], 1

</llo_original>
